<compile_context>
chip_gen: v5e
topology: v5e:2x2
jax: 0.10.0
libtpu: 0.0.40
codegen_flags: <defaults>
</compile_context>

<pallas_src>
import functools
import math

import jax
import jax.numpy as jnp
from jax.experimental import pallas as pl
from jax.experimental.pallas import tpu as pltpu


# ----------------------------------------------------------------------------- kernel ---

def skunit_kernel(x_ref, mask_ref, w1_ref, b1_ref, wb_ref, bb_ref,
                  wz_ref, bz_ref, wa_ref, ba_ref, w3_ref, b3_ref,
                  wsc_ref, bsc_ref, o_ref, *, W, M):
    """One sample per grid step.  x_ref: (1, Cin, HW); o_ref: (1, Cout, HW)."""
    f32 = jnp.float32
    x = x_ref[0].astype(f32)                                   # (Cin, HW)
    HW = x.shape[1]

    # --- Conv1x1(in->mid) + BN1 (folded) ---
    h0 = jnp.dot(w1_ref[...], x, preferred_element_type=f32) + b1_ref[...]   # (Cmid, HW)

    # --- SKConv branches: grouped 3x3 conv (+BN folded) + ReLU, via 9 shifted matmuls ---
    feas = []
    for m in range(M):
        acc = jnp.zeros_like(h0)
        for t in range(9):                                     # t = ky*3 + kx
            dy, dx = t // 3 - 1, t % 3 - 1
            s = dy * W + dx                                    # flattened pixel shift
            if s == 0:
                tap = h0
            else:
                # tap[p] = h0[p + s] where valid, else 0 (zero padding at image border)
                tap = pltpu.roll(h0, shift=(-s) % HW, axis=1) * mask_ref[t]  # (Cmid, HW)
            acc = acc + jnp.dot(wb_ref[m * 9 + t], tap, preferred_element_type=f32)
        feas.append(jnp.maximum(acc + bb_ref[m], 0.0))         # ReLU, (Cmid, HW)

    # --- SK attention ---
    fea_U = feas[0]
    for m in range(1, M):
        fea_U = fea_U + feas[m]
    fea_s = jnp.mean(fea_U, axis=1, keepdims=True)             # (Cmid, 1)  global avg pool
    fea_z = jnp.dot(wz_ref[...], fea_s, preferred_element_type=f32) + bz_ref[...]  # (d, 1)

    logits = [jnp.dot(wa_ref[m], fea_z, preferred_element_type=f32) + ba_ref[m]
              for m in range(M)]                               # M x (Cmid, 1)
    lmax = logits[0]
    for m in range(1, M):
        lmax = jnp.maximum(lmax, logits[m])
    exps = [jnp.exp(l - lmax) for l in logits]
    denom = exps[0]
    for m in range(1, M):
        denom = denom + exps[m]

    fea_v = feas[0] * (exps[0] / denom)
    for m in range(1, M):
        fea_v = fea_v + feas[m] * (exps[m] / denom)            # (Cmid, HW)

    # --- BN2 -> Conv1x1(mid->out) -> BN3 (all folded into w3/b3) ---
    out = jnp.dot(w3_ref[...], fea_v, preferred_element_type=f32) + b3_ref[...]     # (Cout, HW)

    # --- shortcut: Conv1x1(in->out)+BNsc (or identity folded to eye when in==out) ---
    out = out + jnp.dot(wsc_ref[...], x, preferred_element_type=f32) + bsc_ref[...]

    o_ref[0] = out.astype(o_ref.dtype)


# ----------------------------------------------------------------------------- wrapper ---

def _resident(arr):
    """BlockSpec keeping a (small) weight array fully resident across the grid."""
    zeros = (0,) * arr.ndim
    return pl.BlockSpec(arr.shape, lambda i, _z=zeros: _z)


def _make_tap_masks(H, W):
    """(9, 1, HW) f32 masks implementing the zero padding of a 3x3, pad=1 conv."""
    HW = H * W
    hh = jnp.arange(HW) // W
    ww = jnp.arange(HW) % W
    masks = []
    for t in range(9):
        dy, dx = t // 3 - 1, t % 3 - 1
        valid = ((hh + dy >= 0) & (hh + dy < H) & (ww + dx >= 0) & (ww + dx < W))
        masks.append(valid.astype(jnp.float32))
    return jnp.stack(masks).reshape(9, 1, HW)


def skunit_forward(x, fp, *, M):
    """x: (B, Cin, H, W). fp: folded parameter dict. Returns (B, Cout, H, W)."""
    B, Cin, H, W = x.shape
    HW = H * W
    Cmid = fp['w1'].shape[0]
    Cout = fp['w3'].shape[0]

    xf = x.reshape(B, Cin, HW)
    tapmask = _make_tap_masks(H, W)

    args = (xf, tapmask, fp['w1'], fp['b1'], fp['wb'], fp['bb'], fp['wz'], fp['bz'],
            fp['wa'], fp['ba'], fp['w3'], fp['b3'], fp['wsc'], fp['bsc'])

    in_specs = [pl.BlockSpec((1, Cin, HW), lambda i: (i, 0, 0))]
    in_specs += [_resident(a) for a in args[1:]]

    # VMEM budget: double-buffered per-sample I/O + resident weights + working values.
    itemsize = x.dtype.itemsize
    io_bytes = (Cin + Cout) * HW * itemsize
    weight_bytes = sum(int(a.size) * a.dtype.itemsize for a in args[1:])
    work_bytes = (3 + 2 * M) * Cmid * HW * 4
    vmem_limit = int(min(64 << 20, max(16 << 20,
                                       4 * io_bytes + 2 * weight_bytes + 2 * work_bytes)))

    flops = 2 * B * HW * (Cin * Cmid + M * 9 * Cmid * Cmid + Cmid * Cout + Cin * Cout)
    cost = pl.CostEstimate(flops=flops,
                           transcendentals=B * M * Cmid,
                           bytes_accessed=B * io_bytes + weight_bytes)

    out = pl.pallas_call(
        functools.partial(skunit_kernel, W=W, M=M),
        out_shape=jax.ShapeDtypeStruct((B, Cout, HW), x.dtype),
        grid_spec=pltpu.PrefetchScalarGridSpec(
            num_scalar_prefetch=0,
            grid=(B,),
            in_specs=in_specs,
            out_specs=pl.BlockSpec((1, Cout, HW), lambda i: (i, 0, 0)),
        ),
        compiler_params=pltpu.CompilerParams(
            dimension_semantics=("parallel",),
            vmem_limit_bytes=vmem_limit),
        cost_estimate=cost,
    )(*args)
    return out.reshape(B, Cout, H, W)


# -------------------------------------------------------- parameter build / BN folding ---

def _affine(bn, eps=1e-5):
    gamma, beta, mean, var = bn
    s = gamma / jnp.sqrt(var + eps)
    return s, beta - mean * s


def _densify_grouped(w, G):
    """(Cout, Cin//G, 3, 3) grouped conv weight -> (9, Cout, Cin) block-diagonal dense."""
    Cout, Cing, KH, KW = w.shape
    Cin = Cing * G
    outg = Cout // G
    dense = jnp.zeros((KH * KW, Cout, Cin), w.dtype)
    for g in range(G):
        blk = w[g * outg:(g + 1) * outg]                          # (outg, Cing, 3, 3)
        blk = jnp.transpose(blk, (2, 3, 0, 1)).reshape(KH * KW, outg, Cing)
        dense = dense.at[:, g * outg:(g + 1) * outg, g * Cing:(g + 1) * Cing].set(blk)
    return dense


def fold_params(p, *, M, G, Cout):
    """Fold every eval-mode BatchNorm into its adjacent conv; shape for the kernel."""
    s1, t1 = _affine(p['bn1'])
    w1f = p['w1'] * s1[:, None]
    b1f = p['b1'] * s1 + t1

    wb_list, bb_list = [], []
    for m in range(M):
        dense = _densify_grouped(p['wconv'][m], G)                # (9, Cmid, Cmid)
        sm, tm = _affine(p['bnb'][m])
        wb_list.append(dense * sm[None, :, None])
        bb_list.append(p['bconv'][m] * sm + tm)
    wb = jnp.concatenate(wb_list, axis=0)                         # (M*9, Cmid, Cmid)
    bb = jnp.stack(bb_list)[:, :, None]                           # (M, Cmid, 1)

    s2, t2 = _affine(p['bn2'])
    s3, t3 = _affine(p['bn3'])
    w3a = p['w3'] * s2[None, :]
    b3a = p['w3'] @ t2 + p['b3']
    w3f = w3a * s3[:, None]
    b3f = b3a * s3 + t3

    if 'wsc' in p:
        ssc, tsc = _affine(p['bnsc'])
        wscf = p['wsc'] * ssc[:, None]
        bscf = p['bsc'] * ssc + tsc
    else:  # in_features == out_features -> identity shortcut
        wscf = jnp.eye(Cout, dtype=jnp.float32)
        bscf = jnp.zeros((Cout,), jnp.float32)

    return dict(w1=w1f, b1=b1f[:, None], wb=wb, bb=bb,
                wz=p['wz'], bz=p['bz'][:, None],
                wa=jnp.stack(p['wa']), ba=jnp.stack(p['ba'])[:, :, None],
                w3=w3f, b3=b3f[:, None], wsc=wscf, bsc=bscf[:, None])


def make_params(key, Cin, Cout, Cmid, M, G, d):
    """Deterministic synthetic parameters with PyTorch-like init bounds + BN stats."""
    ks = iter(jax.random.split(key, 64))

    def unif(shape, bound):
        return jax.random.uniform(next(ks), shape, minval=-bound, maxval=bound,
                                  dtype=jnp.float32)

    def bn(C):
        gamma = jax.random.uniform(next(ks), (C,), minval=0.5, maxval=1.5, dtype=jnp.float32)
        beta = unif((C,), 0.2)
        mean = unif((C,), 0.2)
        var = jax.random.uniform(next(ks), (C,), minval=0.5, maxval=1.5, dtype=jnp.float32)
        return (gamma, beta, mean, var)

    p = {}
    b = 1.0 / math.sqrt(Cin)
    p['w1'], p['b1'], p['bn1'] = unif((Cmid, Cin), b), unif((Cmid,), b), bn(Cmid)
    bc = 1.0 / math.sqrt((Cmid // G) * 9)
    p['wconv'] = [unif((Cmid, Cmid // G, 3, 3), bc) for _ in range(M)]
    p['bconv'] = [unif((Cmid,), bc) for _ in range(M)]
    p['bnb'] = [bn(Cmid) for _ in range(M)]
    bz = 1.0 / math.sqrt(Cmid)
    p['wz'], p['bz'] = unif((d, Cmid), bz), unif((d,), bz)
    ba = 1.0 / math.sqrt(d)
    p['wa'] = [unif((Cmid, d), ba) for _ in range(M)]
    p['ba'] = [unif((Cmid,), ba) for _ in range(M)]
    p['bn2'] = bn(Cmid)
    bo = 1.0 / math.sqrt(Cmid)
    p['w3'], p['b3'], p['bn3'] = unif((Cout, Cmid), bo), unif((Cout,), bo), bn(Cout)
    if Cin != Cout:
        bs = 1.0 / math.sqrt(Cin)
        p['wsc'], p['bsc'], p['bnsc'] = unif((Cout, Cin), bs), unif((Cout,), bs), bn(Cout)
    return p


# --------------------------------------------------------------------- pure-JAX reference

def skunit_reference(x, p, *, M, G):
    prec = jax.lax.Precision.HIGHEST

    def bn(y, params):
        gamma, beta, mean, var = params
        s = gamma / jnp.sqrt(var + 1e-5)
        return y * s[None, :, None, None] + (beta - mean * s)[None, :, None, None]

    def conv1x1(y, w, b):
        return jnp.einsum('oc,bchw->bohw', w, y, precision=prec) + b[None, :, None, None]

    h = bn(conv1x1(x, p['w1'], p['b1']), p['bn1'])
    feas = []
    for m in range(M):
        c = jax.lax.conv_general_dilated(
            h, p['wconv'][m], window_strides=(1, 1), padding=((1, 1), (1, 1)),
            dimension_numbers=('NCHW', 'OIHW', 'NCHW'),
            feature_group_count=G, precision=prec)
        c = c + p['bconv'][m][None, :, None, None]
        feas.append(jax.nn.relu(bn(c, p['bnb'][m])))
    fea_U = sum(feas)
    fea_s = fea_U.mean(axis=(2, 3))                                      # (B, Cmid)
    fea_z = jnp.dot(fea_s, p['wz'].T, precision=prec) + p['bz']          # (B, d)
    logits = jnp.stack([jnp.dot(fea_z, p['wa'][m].T, precision=prec) + p['ba'][m]
                        for m in range(M)], axis=1)                      # (B, M, Cmid)
    attn = jax.nn.softmax(logits, axis=1)
    fea_v = sum(feas[m] * attn[:, m][:, :, None, None] for m in range(M))
    out = bn(conv1x1(bn(fea_v, p['bn2']), p['w3'], p['b3']), p['bn3'])
    if 'wsc' in p:
        sc = bn(conv1x1(x, p['wsc'], p['bsc']), p['bnsc'])
    else:
        sc = x
    return out + sc


# -------------------------------------------------------------------------------- main ---

if __name__ == "__main__":
    # Small SKUnit: in=8 -> out=16 (mid=8), 16x16 spatial, M=2 branches, G=4 groups,
    # r=2, L=4 -> d=4, stride=1.
    B, Cin, Cout, H, W = 2, 8, 16, 16, 16
    M, G, r, L = 2, 4, 2, 4
    Cmid = Cout // 2
    d = max(Cmid // r, L)

    key = jax.random.PRNGKey(0)
    kx, kp = jax.random.split(key)
    x = jax.random.normal(kx, (B, Cin, H, W), dtype=jnp.float32)

    raw = make_params(kp, Cin, Cout, Cmid, M, G, d)
    fp = fold_params(raw, M=M, G=G, Cout=Cout)

    out = skunit_forward(x, fp, M=M)
    out = jax.block_until_ready(out)

    ref = skunit_reference(x, raw, M=M, G=G)
    assert out.shape == (B, Cout, H, W)
    max_err = float(jnp.max(jnp.abs(out - ref)))
    assert jnp.allclose(out, ref, atol=2e-3, rtol=2e-3), \
        f"mismatch vs reference, max abs err {max_err}"

    print("KERNEL_OK")
</pallas_src>

<mosaic_0001>
module attributes {stable_mosaic.version = 11 : i64} {
  func.func @skunit_kernel(%arg0: i32, %arg1: memref<1x8x256xf32, #tpu.memory_space<vmem>>, %arg2: memref<9x1x256xf32, #tpu.memory_space<vmem>>, %arg3: memref<8x8xf32, #tpu.memory_space<vmem>>, %arg4: memref<8x1xf32, #tpu.memory_space<vmem>>, %arg5: memref<18x8x8xf32, #tpu.memory_space<vmem>>, %arg6: memref<2x8x1xf32, #tpu.memory_space<vmem>>, %arg7: memref<4x8xf32, #tpu.memory_space<vmem>>, %arg8: memref<4x1xf32, #tpu.memory_space<vmem>>, %arg9: memref<2x8x4xf32, #tpu.memory_space<vmem>>, %arg10: memref<2x8x1xf32, #tpu.memory_space<vmem>>, %arg11: memref<16x8xf32, #tpu.memory_space<vmem>>, %arg12: memref<16x1xf32, #tpu.memory_space<vmem>>, %arg13: memref<16x8xf32, #tpu.memory_space<vmem>>, %arg14: memref<16x1xf32, #tpu.memory_space<vmem>>, %arg15: memref<1x16x256xf32, #tpu.memory_space<vmem>>) attributes {dimension_semantics = [#tpu.dimension_semantics<parallel>], iteration_bounds = array<i64: 2>, scalar_prefetch = 0 : i64, scratch_operands = 0 : i64, tpu.core_type = #tpu.core_type<tc>, window_params = [{transform_indices = @transform_0, window_bounds = array<i64: 1, 8, 256>}, {pipeline_mode = #tpu.pipeline_mode<synchronous>, transform_indices = @transform_1, window_bounds = array<i64: 9, 1, 256>}, {pipeline_mode = #tpu.pipeline_mode<synchronous>, transform_indices = @transform_2, window_bounds = array<i64: 8, 8>}, {pipeline_mode = #tpu.pipeline_mode<synchronous>, transform_indices = @transform_3, window_bounds = array<i64: 8, 1>}, {pipeline_mode = #tpu.pipeline_mode<synchronous>, transform_indices = @transform_4, window_bounds = array<i64: 18, 8, 8>}, {pipeline_mode = #tpu.pipeline_mode<synchronous>, transform_indices = @transform_5, window_bounds = array<i64: 2, 8, 1>}, {pipeline_mode = #tpu.pipeline_mode<synchronous>, transform_indices = @transform_6, window_bounds = array<i64: 4, 8>}, {pipeline_mode = #tpu.pipeline_mode<synchronous>, transform_indices = @transform_7, window_bounds = array<i64: 4, 1>}, {pipeline_mode = #tpu.pipeline_mode<synchronous>, transform_indices = @transform_8, window_bounds = array<i64: 2, 8, 4>}, {pipeline_mode = #tpu.pipeline_mode<synchronous>, transform_indices = @transform_9, window_bounds = array<i64: 2, 8, 1>}, {pipeline_mode = #tpu.pipeline_mode<synchronous>, transform_indices = @transform_10, window_bounds = array<i64: 16, 8>}, {pipeline_mode = #tpu.pipeline_mode<synchronous>, transform_indices = @transform_11, window_bounds = array<i64: 16, 1>}, {pipeline_mode = #tpu.pipeline_mode<synchronous>, transform_indices = @transform_12, window_bounds = array<i64: 16, 8>}, {pipeline_mode = #tpu.pipeline_mode<synchronous>, transform_indices = @transform_13, window_bounds = array<i64: 16, 1>}, {transform_indices = @transform_14, window_bounds = array<i64: 1, 16, 256>}]} {
    %c0 = arith.constant 0 : index
    %c0_0 = arith.constant 0 : index
    %c0_1 = arith.constant 0 : index
    %0 = vector.load %arg1[%c0, %c0_0, %c0_1] : memref<1x8x256xf32, #tpu.memory_space<vmem>>, vector<1x8x256xf32>
    %1 = vector.shape_cast %0 : vector<1x8x256xf32> to vector<8x256xf32>
    %c0_2 = arith.constant 0 : index
    %c0_3 = arith.constant 0 : index
    %2 = vector.load %arg3[%c0_2, %c0_3] : memref<8x8xf32, #tpu.memory_space<vmem>>, vector<8x8xf32>
    %cst = arith.constant dense<0.000000e+00> : vector<8x256xf32>
    %3 = tpu.matmul %2, %1, %cst {dimension_numbers = #tpu.dot_dimension_numbers<[1], [0], [0], [1], [0, 0, 1, 1], [], []>} : vector<8x8xf32>, vector<8x256xf32>, vector<8x256xf32> -> vector<8x256xf32>
    %c0_4 = arith.constant 0 : index
    %c0_5 = arith.constant 0 : index
    %4 = vector.load %arg4[%c0_4, %c0_5] : memref<8x1xf32, #tpu.memory_space<vmem>>, vector<8x1xf32>
    %5 = vector.broadcast %4 : vector<8x1xf32> to vector<8x256xf32>
    %6 = arith.addf %3, %5 : vector<8x256xf32>
    %cst_6 = arith.constant 0.000000e+00 : f32
    %7 = vector.broadcast %cst_6 : f32 to vector<8x256xf32>
    %c17_i32 = arith.constant 17 : i32
    %8 = tpu.dynamic_rotate %6 by %c17_i32 dim 1 : vector<8x256xf32>, i32 -> vector<8x256xf32>
    %c0_7 = arith.constant 0 : index
    %c0_8 = arith.constant 0 : index
    %c0_9 = arith.constant 0 : index
    %9 = vector.load %arg2[%c0_7, %c0_8, %c0_9] : memref<9x1x256xf32, #tpu.memory_space<vmem>>, vector<1x1x256xf32>
    %10 = vector.shape_cast %9 : vector<1x1x256xf32> to vector<1x256xf32>
    %11 = vector.broadcast %10 : vector<1x256xf32> to vector<8x256xf32>
    %12 = arith.mulf %8, %11 : vector<8x256xf32>
    %c0_10 = arith.constant 0 : index
    %c0_11 = arith.constant 0 : index
    %c0_12 = arith.constant 0 : index
    %13 = vector.load %arg5[%c0_10, %c0_11, %c0_12] : memref<18x8x8xf32, #tpu.memory_space<vmem>>, vector<1x8x8xf32>
    %14 = vector.shape_cast %13 : vector<1x8x8xf32> to vector<8x8xf32>
    %cst_13 = arith.constant dense<0.000000e+00> : vector<8x256xf32>
    %15 = tpu.matmul %14, %12, %cst_13 {dimension_numbers = #tpu.dot_dimension_numbers<[1], [0], [0], [1], [0, 0, 1, 1], [], []>} : vector<8x8xf32>, vector<8x256xf32>, vector<8x256xf32> -> vector<8x256xf32>
    %16 = arith.addf %7, %15 : vector<8x256xf32>
    %c16_i32 = arith.constant 16 : i32
    %17 = tpu.dynamic_rotate %6 by %c16_i32 dim 1 : vector<8x256xf32>, i32 -> vector<8x256xf32>
    %c1 = arith.constant 1 : index
    %c0_14 = arith.constant 0 : index
    %c0_15 = arith.constant 0 : index
    %18 = vector.load %arg2[%c1, %c0_14, %c0_15] : memref<9x1x256xf32, #tpu.memory_space<vmem>>, vector<1x1x256xf32>
    %19 = vector.shape_cast %18 : vector<1x1x256xf32> to vector<1x256xf32>
    %20 = vector.broadcast %19 : vector<1x256xf32> to vector<8x256xf32>
    %21 = arith.mulf %17, %20 : vector<8x256xf32>
    %c1_16 = arith.constant 1 : index
    %c0_17 = arith.constant 0 : index
    %c0_18 = arith.constant 0 : index
    %22 = vector.load %arg5[%c1_16, %c0_17, %c0_18] : memref<18x8x8xf32, #tpu.memory_space<vmem>>, vector<1x8x8xf32>
    %23 = vector.shape_cast %22 : vector<1x8x8xf32> to vector<8x8xf32>
    %cst_19 = arith.constant dense<0.000000e+00> : vector<8x256xf32>
    %24 = tpu.matmul %23, %21, %cst_19 {dimension_numbers = #tpu.dot_dimension_numbers<[1], [0], [0], [1], [0, 0, 1, 1], [], []>} : vector<8x8xf32>, vector<8x256xf32>, vector<8x256xf32> -> vector<8x256xf32>
    %25 = arith.addf %16, %24 : vector<8x256xf32>
    %c15_i32 = arith.constant 15 : i32
    %26 = tpu.dynamic_rotate %6 by %c15_i32 dim 1 : vector<8x256xf32>, i32 -> vector<8x256xf32>
    %c2 = arith.constant 2 : index
    %c0_20 = arith.constant 0 : index
    %c0_21 = arith.constant 0 : index
    %27 = vector.load %arg2[%c2, %c0_20, %c0_21] : memref<9x1x256xf32, #tpu.memory_space<vmem>>, vector<1x1x256xf32>
    %28 = vector.shape_cast %27 : vector<1x1x256xf32> to vector<1x256xf32>
    %29 = vector.broadcast %28 : vector<1x256xf32> to vector<8x256xf32>
    %30 = arith.mulf %26, %29 : vector<8x256xf32>
    %c2_22 = arith.constant 2 : index
    %c0_23 = arith.constant 0 : index
    %c0_24 = arith.constant 0 : index
    %31 = vector.load %arg5[%c2_22, %c0_23, %c0_24] : memref<18x8x8xf32, #tpu.memory_space<vmem>>, vector<1x8x8xf32>
    %32 = vector.shape_cast %31 : vector<1x8x8xf32> to vector<8x8xf32>
    %cst_25 = arith.constant dense<0.000000e+00> : vector<8x256xf32>
    %33 = tpu.matmul %32, %30, %cst_25 {dimension_numbers = #tpu.dot_dimension_numbers<[1], [0], [0], [1], [0, 0, 1, 1], [], []>} : vector<8x8xf32>, vector<8x256xf32>, vector<8x256xf32> -> vector<8x256xf32>
    %34 = arith.addf %25, %33 : vector<8x256xf32>
    %c1_i32 = arith.constant 1 : i32
    %35 = tpu.dynamic_rotate %6 by %c1_i32 dim 1 : vector<8x256xf32>, i32 -> vector<8x256xf32>
    %c3 = arith.constant 3 : index
    %c0_26 = arith.constant 0 : index
    %c0_27 = arith.constant 0 : index
    %36 = vector.load %arg2[%c3, %c0_26, %c0_27] : memref<9x1x256xf32, #tpu.memory_space<vmem>>, vector<1x1x256xf32>
    %37 = vector.shape_cast %36 : vector<1x1x256xf32> to vector<1x256xf32>
    %38 = vector.broadcast %37 : vector<1x256xf32> to vector<8x256xf32>
    %39 = arith.mulf %35, %38 : vector<8x256xf32>
    %c3_28 = arith.constant 3 : index
    %c0_29 = arith.constant 0 : index
    %c0_30 = arith.constant 0 : index
    %40 = vector.load %arg5[%c3_28, %c0_29, %c0_30] : memref<18x8x8xf32, #tpu.memory_space<vmem>>, vector<1x8x8xf32>
    %41 = vector.shape_cast %40 : vector<1x8x8xf32> to vector<8x8xf32>
    %cst_31 = arith.constant dense<0.000000e+00> : vector<8x256xf32>
    %42 = tpu.matmul %41, %39, %cst_31 {dimension_numbers = #tpu.dot_dimension_numbers<[1], [0], [0], [1], [0, 0, 1, 1], [], []>} : vector<8x8xf32>, vector<8x256xf32>, vector<8x256xf32> -> vector<8x256xf32>
    %43 = arith.addf %34, %42 : vector<8x256xf32>
    %c4 = arith.constant 4 : index
    %c0_32 = arith.constant 0 : index
    %c0_33 = arith.constant 0 : index
    %44 = vector.load %arg5[%c4, %c0_32, %c0_33] : memref<18x8x8xf32, #tpu.memory_space<vmem>>, vector<1x8x8xf32>
    %45 = vector.shape_cast %44 : vector<1x8x8xf32> to vector<8x8xf32>
    %cst_34 = arith.constant dense<0.000000e+00> : vector<8x256xf32>
    %46 = tpu.matmul %45, %6, %cst_34 {dimension_numbers = #tpu.dot_dimension_numbers<[1], [0], [0], [1], [0, 0, 1, 1], [], []>} : vector<8x8xf32>, vector<8x256xf32>, vector<8x256xf32> -> vector<8x256xf32>
    %47 = arith.addf %43, %46 : vector<8x256xf32>
    %c255_i32 = arith.constant 255 : i32
    %48 = tpu.dynamic_rotate %6 by %c255_i32 dim 1 : vector<8x256xf32>, i32 -> vector<8x256xf32>
    %c5 = arith.constant 5 : index
    %c0_35 = arith.constant 0 : index
    %c0_36 = arith.constant 0 : index
    %49 = vector.load %arg2[%c5, %c0_35, %c0_36] : memref<9x1x256xf32, #tpu.memory_space<vmem>>, vector<1x1x256xf32>
    %50 = vector.shape_cast %49 : vector<1x1x256xf32> to vector<1x256xf32>
    %51 = vector.broadcast %50 : vector<1x256xf32> to vector<8x256xf32>
    %52 = arith.mulf %48, %51 : vector<8x256xf32>
    %c5_37 = arith.constant 5 : index
    %c0_38 = arith.constant 0 : index
    %c0_39 = arith.constant 0 : index
    %53 = vector.load %arg5[%c5_37, %c0_38, %c0_39] : memref<18x8x8xf32, #tpu.memory_space<vmem>>, vector<1x8x8xf32>
    %54 = vector.shape_cast %53 : vector<1x8x8xf32> to vector<8x8xf32>
    %cst_40 = arith.constant dense<0.000000e+00> : vector<8x256xf32>
    %55 = tpu.matmul %54, %52, %cst_40 {dimension_numbers = #tpu.dot_dimension_numbers<[1], [0], [0], [1], [0, 0, 1, 1], [], []>} : vector<8x8xf32>, vector<8x256xf32>, vector<8x256xf32> -> vector<8x256xf32>
    %56 = arith.addf %47, %55 : vector<8x256xf32>
    %c241_i32 = arith.constant 241 : i32
    %57 = tpu.dynamic_rotate %6 by %c241_i32 dim 1 : vector<8x256xf32>, i32 -> vector<8x256xf32>
    %c6 = arith.constant 6 : index
    %c0_41 = arith.constant 0 : index
    %c0_42 = arith.constant 0 : index
    %58 = vector.load %arg2[%c6, %c0_41, %c0_42] : memref<9x1x256xf32, #tpu.memory_space<vmem>>, vector<1x1x256xf32>
    %59 = vector.shape_cast %58 : vector<1x1x256xf32> to vector<1x256xf32>
    %60 = vector.broadcast %59 : vector<1x256xf32> to vector<8x256xf32>
    %61 = arith.mulf %57, %60 : vector<8x256xf32>
    %c6_43 = arith.constant 6 : index
    %c0_44 = arith.constant 0 : index
    %c0_45 = arith.constant 0 : index
    %62 = vector.load %arg5[%c6_43, %c0_44, %c0_45] : memref<18x8x8xf32, #tpu.memory_space<vmem>>, vector<1x8x8xf32>
    %63 = vector.shape_cast %62 : vector<1x8x8xf32> to vector<8x8xf32>
    %cst_46 = arith.constant dense<0.000000e+00> : vector<8x256xf32>
    %64 = tpu.matmul %63, %61, %cst_46 {dimension_numbers = #tpu.dot_dimension_numbers<[1], [0], [0], [1], [0, 0, 1, 1], [], []>} : vector<8x8xf32>, vector<8x256xf32>, vector<8x256xf32> -> vector<8x256xf32>
    %65 = arith.addf %56, %64 : vector<8x256xf32>
    %c240_i32 = arith.constant 240 : i32
    %66 = tpu.dynamic_rotate %6 by %c240_i32 dim 1 : vector<8x256xf32>, i32 -> vector<8x256xf32>
    %c7 = arith.constant 7 : index
    %c0_47 = arith.constant 0 : index
    %c0_48 = arith.constant 0 : index
    %67 = vector.load %arg2[%c7, %c0_47, %c0_48] : memref<9x1x256xf32, #tpu.memory_space<vmem>>, vector<1x1x256xf32>
    %68 = vector.shape_cast %67 : vector<1x1x256xf32> to vector<1x256xf32>
    %69 = vector.broadcast %68 : vector<1x256xf32> to vector<8x256xf32>
    %70 = arith.mulf %66, %69 : vector<8x256xf32>
    %c7_49 = arith.constant 7 : index
    %c0_50 = arith.constant 0 : index
    %c0_51 = arith.constant 0 : index
    %71 = vector.load %arg5[%c7_49, %c0_50, %c0_51] : memref<18x8x8xf32, #tpu.memory_space<vmem>>, vector<1x8x8xf32>
    %72 = vector.shape_cast %71 : vector<1x8x8xf32> to vector<8x8xf32>
    %cst_52 = arith.constant dense<0.000000e+00> : vector<8x256xf32>
    %73 = tpu.matmul %72, %70, %cst_52 {dimension_numbers = #tpu.dot_dimension_numbers<[1], [0], [0], [1], [0, 0, 1, 1], [], []>} : vector<8x8xf32>, vector<8x256xf32>, vector<8x256xf32> -> vector<8x256xf32>
    %74 = arith.addf %65, %73 : vector<8x256xf32>
    %c239_i32 = arith.constant 239 : i32
    %75 = tpu.dynamic_rotate %6 by %c239_i32 dim 1 : vector<8x256xf32>, i32 -> vector<8x256xf32>
    %c8 = arith.constant 8 : index
    %c0_53 = arith.constant 0 : index
    %c0_54 = arith.constant 0 : index
    %76 = vector.load %arg2[%c8, %c0_53, %c0_54] : memref<9x1x256xf32, #tpu.memory_space<vmem>>, vector<1x1x256xf32>
    %77 = vector.shape_cast %76 : vector<1x1x256xf32> to vector<1x256xf32>
    %78 = vector.broadcast %77 : vector<1x256xf32> to vector<8x256xf32>
    %79 = arith.mulf %75, %78 : vector<8x256xf32>
    %c8_55 = arith.constant 8 : index
    %c0_56 = arith.constant 0 : index
    %c0_57 = arith.constant 0 : index
    %80 = vector.load %arg5[%c8_55, %c0_56, %c0_57] : memref<18x8x8xf32, #tpu.memory_space<vmem>>, vector<1x8x8xf32>
    %81 = vector.shape_cast %80 : vector<1x8x8xf32> to vector<8x8xf32>
    %cst_58 = arith.constant dense<0.000000e+00> : vector<8x256xf32>
    %82 = tpu.matmul %81, %79, %cst_58 {dimension_numbers = #tpu.dot_dimension_numbers<[1], [0], [0], [1], [0, 0, 1, 1], [], []>} : vector<8x8xf32>, vector<8x256xf32>, vector<8x256xf32> -> vector<8x256xf32>
    %83 = arith.addf %74, %82 : vector<8x256xf32>
    %c0_59 = arith.constant 0 : index
    %c0_60 = arith.constant 0 : index
    %c0_61 = arith.constant 0 : index
    %84 = vector.load %arg6[%c0_59, %c0_60, %c0_61] : memref<2x8x1xf32, #tpu.memory_space<vmem>>, vector<1x8x1xf32>
    %85 = vector.shape_cast %84 : vector<1x8x1xf32> to vector<8x1xf32>
    %86 = vector.broadcast %85 : vector<8x1xf32> to vector<8x256xf32>
    %87 = arith.addf %83, %86 : vector<8x256xf32>
    %cst_62 = arith.constant 0.000000e+00 : f32
    %88 = vector.broadcast %cst_62 : f32 to vector<8x256xf32>
    %89 = arith.maximumf %87, %88 : vector<8x256xf32>
    %cst_63 = arith.constant 0.000000e+00 : f32
    %90 = vector.broadcast %cst_63 : f32 to vector<8x256xf32>
    %c17_i32_64 = arith.constant 17 : i32
    %91 = tpu.dynamic_rotate %6 by %c17_i32_64 dim 1 : vector<8x256xf32>, i32 -> vector<8x256xf32>
    %c0_65 = arith.constant 0 : index
    %c0_66 = arith.constant 0 : index
    %c0_67 = arith.constant 0 : index
    %92 = vector.load %arg2[%c0_65, %c0_66, %c0_67] : memref<9x1x256xf32, #tpu.memory_space<vmem>>, vector<1x1x256xf32>
    %93 = vector.shape_cast %92 : vector<1x1x256xf32> to vector<1x256xf32>
    %94 = vector.broadcast %93 : vector<1x256xf32> to vector<8x256xf32>
    %95 = arith.mulf %91, %94 : vector<8x256xf32>
    %c9 = arith.constant 9 : index
    %c0_68 = arith.constant 0 : index
    %c0_69 = arith.constant 0 : index
    %96 = vector.load %arg5[%c9, %c0_68, %c0_69] : memref<18x8x8xf32, #tpu.memory_space<vmem>>, vector<1x8x8xf32>
    %97 = vector.shape_cast %96 : vector<1x8x8xf32> to vector<8x8xf32>
    %cst_70 = arith.constant dense<0.000000e+00> : vector<8x256xf32>
    %98 = tpu.matmul %97, %95, %cst_70 {dimension_numbers = #tpu.dot_dimension_numbers<[1], [0], [0], [1], [0, 0, 1, 1], [], []>} : vector<8x8xf32>, vector<8x256xf32>, vector<8x256xf32> -> vector<8x256xf32>
    %99 = arith.addf %90, %98 : vector<8x256xf32>
    %c16_i32_71 = arith.constant 16 : i32
    %100 = tpu.dynamic_rotate %6 by %c16_i32_71 dim 1 : vector<8x256xf32>, i32 -> vector<8x256xf32>
    %c1_72 = arith.constant 1 : index
    %c0_73 = arith.constant 0 : index
    %c0_74 = arith.constant 0 : index
    %101 = vector.load %arg2[%c1_72, %c0_73, %c0_74] : memref<9x1x256xf32, #tpu.memory_space<vmem>>, vector<1x1x256xf32>
    %102 = vector.shape_cast %101 : vector<1x1x256xf32> to vector<1x256xf32>
    %103 = vector.broadcast %102 : vector<1x256xf32> to vector<8x256xf32>
    %104 = arith.mulf %100, %103 : vector<8x256xf32>
    %c10 = arith.constant 10 : index
    %c0_75 = arith.constant 0 : index
    %c0_76 = arith.constant 0 : index
    %105 = vector.load %arg5[%c10, %c0_75, %c0_76] : memref<18x8x8xf32, #tpu.memory_space<vmem>>, vector<1x8x8xf32>
    %106 = vector.shape_cast %105 : vector<1x8x8xf32> to vector<8x8xf32>
    %cst_77 = arith.constant dense<0.000000e+00> : vector<8x256xf32>
    %107 = tpu.matmul %106, %104, %cst_77 {dimension_numbers = #tpu.dot_dimension_numbers<[1], [0], [0], [1], [0, 0, 1, 1], [], []>} : vector<8x8xf32>, vector<8x256xf32>, vector<8x256xf32> -> vector<8x256xf32>
    %108 = arith.addf %99, %107 : vector<8x256xf32>
    %c15_i32_78 = arith.constant 15 : i32
    %109 = tpu.dynamic_rotate %6 by %c15_i32_78 dim 1 : vector<8x256xf32>, i32 -> vector<8x256xf32>
    %c2_79 = arith.constant 2 : index
    %c0_80 = arith.constant 0 : index
    %c0_81 = arith.constant 0 : index
    %110 = vector.load %arg2[%c2_79, %c0_80, %c0_81] : memref<9x1x256xf32, #tpu.memory_space<vmem>>, vector<1x1x256xf32>
    %111 = vector.shape_cast %110 : vector<1x1x256xf32> to vector<1x256xf32>
    %112 = vector.broadcast %111 : vector<1x256xf32> to vector<8x256xf32>
    %113 = arith.mulf %109, %112 : vector<8x256xf32>
    %c11 = arith.constant 11 : index
    %c0_82 = arith.constant 0 : index
    %c0_83 = arith.constant 0 : index
    %114 = vector.load %arg5[%c11, %c0_82, %c0_83] : memref<18x8x8xf32, #tpu.memory_space<vmem>>, vector<1x8x8xf32>
    %115 = vector.shape_cast %114 : vector<1x8x8xf32> to vector<8x8xf32>
    %cst_84 = arith.constant dense<0.000000e+00> : vector<8x256xf32>
    %116 = tpu.matmul %115, %113, %cst_84 {dimension_numbers = #tpu.dot_dimension_numbers<[1], [0], [0], [1], [0, 0, 1, 1], [], []>} : vector<8x8xf32>, vector<8x256xf32>, vector<8x256xf32> -> vector<8x256xf32>
    %117 = arith.addf %108, %116 : vector<8x256xf32>
    %c1_i32_85 = arith.constant 1 : i32
    %118 = tpu.dynamic_rotate %6 by %c1_i32_85 dim 1 : vector<8x256xf32>, i32 -> vector<8x256xf32>
    %c3_86 = arith.constant 3 : index
    %c0_87 = arith.constant 0 : index
    %c0_88 = arith.constant 0 : index
    %119 = vector.load %arg2[%c3_86, %c0_87, %c0_88] : memref<9x1x256xf32, #tpu.memory_space<vmem>>, vector<1x1x256xf32>
    %120 = vector.shape_cast %119 : vector<1x1x256xf32> to vector<1x256xf32>
    %121 = vector.broadcast %120 : vector<1x256xf32> to vector<8x256xf32>
    %122 = arith.mulf %118, %121 : vector<8x256xf32>
    %c12 = arith.constant 12 : index
    %c0_89 = arith.constant 0 : index
    %c0_90 = arith.constant 0 : index
    %123 = vector.load %arg5[%c12, %c0_89, %c0_90] : memref<18x8x8xf32, #tpu.memory_space<vmem>>, vector<1x8x8xf32>
    %124 = vector.shape_cast %123 : vector<1x8x8xf32> to vector<8x8xf32>
    %cst_91 = arith.constant dense<0.000000e+00> : vector<8x256xf32>
    %125 = tpu.matmul %124, %122, %cst_91 {dimension_numbers = #tpu.dot_dimension_numbers<[1], [0], [0], [1], [0, 0, 1, 1], [], []>} : vector<8x8xf32>, vector<8x256xf32>, vector<8x256xf32> -> vector<8x256xf32>
    %126 = arith.addf %117, %125 : vector<8x256xf32>
    %c13 = arith.constant 13 : index
    %c0_92 = arith.constant 0 : index
    %c0_93 = arith.constant 0 : index
    %127 = vector.load %arg5[%c13, %c0_92, %c0_93] : memref<18x8x8xf32, #tpu.memory_space<vmem>>, vector<1x8x8xf32>
    %128 = vector.shape_cast %127 : vector<1x8x8xf32> to vector<8x8xf32>
    %cst_94 = arith.constant dense<0.000000e+00> : vector<8x256xf32>
    %129 = tpu.matmul %128, %6, %cst_94 {dimension_numbers = #tpu.dot_dimension_numbers<[1], [0], [0], [1], [0, 0, 1, 1], [], []>} : vector<8x8xf32>, vector<8x256xf32>, vector<8x256xf32> -> vector<8x256xf32>
    %130 = arith.addf %126, %129 : vector<8x256xf32>
    %c255_i32_95 = arith.constant 255 : i32
    %131 = tpu.dynamic_rotate %6 by %c255_i32_95 dim 1 : vector<8x256xf32>, i32 -> vector<8x256xf32>
    %c5_96 = arith.constant 5 : index
    %c0_97 = arith.constant 0 : index
    %c0_98 = arith.constant 0 : index
    %132 = vector.load %arg2[%c5_96, %c0_97, %c0_98] : memref<9x1x256xf32, #tpu.memory_space<vmem>>, vector<1x1x256xf32>
    %133 = vector.shape_cast %132 : vector<1x1x256xf32> to vector<1x256xf32>
    %134 = vector.broadcast %133 : vector<1x256xf32> to vector<8x256xf32>
    %135 = arith.mulf %131, %134 : vector<8x256xf32>
    %c14 = arith.constant 14 : index
    %c0_99 = arith.constant 0 : index
    %c0_100 = arith.constant 0 : index
    %136 = vector.load %arg5[%c14, %c0_99, %c0_100] : memref<18x8x8xf32, #tpu.memory_space<vmem>>, vector<1x8x8xf32>
    %137 = vector.shape_cast %136 : vector<1x8x8xf32> to vector<8x8xf32>
    %cst_101 = arith.constant dense<0.000000e+00> : vector<8x256xf32>
    %138 = tpu.matmul %137, %135, %cst_101 {dimension_numbers = #tpu.dot_dimension_numbers<[1], [0], [0], [1], [0, 0, 1, 1], [], []>} : vector<8x8xf32>, vector<8x256xf32>, vector<8x256xf32> -> vector<8x256xf32>
    %139 = arith.addf %130, %138 : vector<8x256xf32>
    %c241_i32_102 = arith.constant 241 : i32
    %140 = tpu.dynamic_rotate %6 by %c241_i32_102 dim 1 : vector<8x256xf32>, i32 -> vector<8x256xf32>
    %c6_103 = arith.constant 6 : index
    %c0_104 = arith.constant 0 : index
    %c0_105 = arith.constant 0 : index
    %141 = vector.load %arg2[%c6_103, %c0_104, %c0_105] : memref<9x1x256xf32, #tpu.memory_space<vmem>>, vector<1x1x256xf32>
    %142 = vector.shape_cast %141 : vector<1x1x256xf32> to vector<1x256xf32>
    %143 = vector.broadcast %142 : vector<1x256xf32> to vector<8x256xf32>
    %144 = arith.mulf %140, %143 : vector<8x256xf32>
    %c15 = arith.constant 15 : index
    %c0_106 = arith.constant 0 : index
    %c0_107 = arith.constant 0 : index
    %145 = vector.load %arg5[%c15, %c0_106, %c0_107] : memref<18x8x8xf32, #tpu.memory_space<vmem>>, vector<1x8x8xf32>
    %146 = vector.shape_cast %145 : vector<1x8x8xf32> to vector<8x8xf32>
    %cst_108 = arith.constant dense<0.000000e+00> : vector<8x256xf32>
    %147 = tpu.matmul %146, %144, %cst_108 {dimension_numbers = #tpu.dot_dimension_numbers<[1], [0], [0], [1], [0, 0, 1, 1], [], []>} : vector<8x8xf32>, vector<8x256xf32>, vector<8x256xf32> -> vector<8x256xf32>
    %148 = arith.addf %139, %147 : vector<8x256xf32>
    %c240_i32_109 = arith.constant 240 : i32
    %149 = tpu.dynamic_rotate %6 by %c240_i32_109 dim 1 : vector<8x256xf32>, i32 -> vector<8x256xf32>
    %c7_110 = arith.constant 7 : index
    %c0_111 = arith.constant 0 : index
    %c0_112 = arith.constant 0 : index
    %150 = vector.load %arg2[%c7_110, %c0_111, %c0_112] : memref<9x1x256xf32, #tpu.memory_space<vmem>>, vector<1x1x256xf32>
    %151 = vector.shape_cast %150 : vector<1x1x256xf32> to vector<1x256xf32>
    %152 = vector.broadcast %151 : vector<1x256xf32> to vector<8x256xf32>
    %153 = arith.mulf %149, %152 : vector<8x256xf32>
    %c16 = arith.constant 16 : index
    %c0_113 = arith.constant 0 : index
    %c0_114 = arith.constant 0 : index
    %154 = vector.load %arg5[%c16, %c0_113, %c0_114] : memref<18x8x8xf32, #tpu.memory_space<vmem>>, vector<1x8x8xf32>
    %155 = vector.shape_cast %154 : vector<1x8x8xf32> to vector<8x8xf32>
    %cst_115 = arith.constant dense<0.000000e+00> : vector<8x256xf32>
    %156 = tpu.matmul %155, %153, %cst_115 {dimension_numbers = #tpu.dot_dimension_numbers<[1], [0], [0], [1], [0, 0, 1, 1], [], []>} : vector<8x8xf32>, vector<8x256xf32>, vector<8x256xf32> -> vector<8x256xf32>
    %157 = arith.addf %148, %156 : vector<8x256xf32>
    %c239_i32_116 = arith.constant 239 : i32
    %158 = tpu.dynamic_rotate %6 by %c239_i32_116 dim 1 : vector<8x256xf32>, i32 -> vector<8x256xf32>
    %c8_117 = arith.constant 8 : index
    %c0_118 = arith.constant 0 : index
    %c0_119 = arith.constant 0 : index
    %159 = vector.load %arg2[%c8_117, %c0_118, %c0_119] : memref<9x1x256xf32, #tpu.memory_space<vmem>>, vector<1x1x256xf32>
    %160 = vector.shape_cast %159 : vector<1x1x256xf32> to vector<1x256xf32>
    %161 = vector.broadcast %160 : vector<1x256xf32> to vector<8x256xf32>
    %162 = arith.mulf %158, %161 : vector<8x256xf32>
    %c17 = arith.constant 17 : index
    %c0_120 = arith.constant 0 : index
    %c0_121 = arith.constant 0 : index
    %163 = vector.load %arg5[%c17, %c0_120, %c0_121] : memref<18x8x8xf32, #tpu.memory_space<vmem>>, vector<1x8x8xf32>
    %164 = vector.shape_cast %163 : vector<1x8x8xf32> to vector<8x8xf32>
    %cst_122 = arith.constant dense<0.000000e+00> : vector<8x256xf32>
    %165 = tpu.matmul %164, %162, %cst_122 {dimension_numbers = #tpu.dot_dimension_numbers<[1], [0], [0], [1], [0, 0, 1, 1], [], []>} : vector<8x8xf32>, vector<8x256xf32>, vector<8x256xf32> -> vector<8x256xf32>
    %166 = arith.addf %157, %165 : vector<8x256xf32>
    %c1_123 = arith.constant 1 : index
    %c0_124 = arith.constant 0 : index
    %c0_125 = arith.constant 0 : index
    %167 = vector.load %arg6[%c1_123, %c0_124, %c0_125] : memref<2x8x1xf32, #tpu.memory_space<vmem>>, vector<1x8x1xf32>
    %168 = vector.shape_cast %167 : vector<1x8x1xf32> to vector<8x1xf32>
    %169 = vector.broadcast %168 : vector<8x1xf32> to vector<8x256xf32>
    %170 = arith.addf %166, %169 : vector<8x256xf32>
    %cst_126 = arith.constant 0.000000e+00 : f32
    %171 = vector.broadcast %cst_126 : f32 to vector<8x256xf32>
    %172 = arith.maximumf %170, %171 : vector<8x256xf32>
    %173 = arith.addf %89, %172 : vector<8x256xf32>
    %cst_127 = arith.constant dense<0.000000e+00> : vector<8xf32>
    %174 = vector.multi_reduction <add>, %173, %cst_127 [1] : vector<8x256xf32> to vector<8xf32>
    %175 = vector.shape_cast %174 : vector<8xf32> to vector<8x1xf32>
    %cst_128 = arith.constant 2.560000e+02 : f32
    %176 = vector.broadcast %cst_128 : f32 to vector<8x1xf32>
    %177 = arith.divf %175, %176 : vector<8x1xf32>
    %c0_129 = arith.constant 0 : index
    %c0_130 = arith.constant 0 : index
    %178 = vector.load %arg7[%c0_129, %c0_130] : memref<4x8xf32, #tpu.memory_space<vmem>>, vector<4x8xf32>
    %cst_131 = arith.constant dense<0.000000e+00> : vector<4x1xf32>
    %179 = tpu.matmul %178, %177, %cst_131 {dimension_numbers = #tpu.dot_dimension_numbers<[1], [0], [0], [1], [0, 0, 1, 1], [], []>} : vector<4x8xf32>, vector<8x1xf32>, vector<4x1xf32> -> vector<4x1xf32>
    %c0_132 = arith.constant 0 : index
    %c0_133 = arith.constant 0 : index
    %180 = vector.load %arg8[%c0_132, %c0_133] : memref<4x1xf32, #tpu.memory_space<vmem>>, vector<4x1xf32>
    %181 = arith.addf %179, %180 : vector<4x1xf32>
    %c0_134 = arith.constant 0 : index
    %c0_135 = arith.constant 0 : index
    %c0_136 = arith.constant 0 : index
    %182 = vector.load %arg9[%c0_134, %c0_135, %c0_136] : memref<2x8x4xf32, #tpu.memory_space<vmem>>, vector<1x8x4xf32>
    %183 = vector.shape_cast %182 : vector<1x8x4xf32> to vector<8x4xf32>
    %cst_137 = arith.constant dense<0.000000e+00> : vector<8x1xf32>
    %184 = tpu.matmul %183, %181, %cst_137 {dimension_numbers = #tpu.dot_dimension_numbers<[1], [0], [0], [1], [0, 0, 1, 1], [], []>} : vector<8x4xf32>, vector<4x1xf32>, vector<8x1xf32> -> vector<8x1xf32>
    %c0_138 = arith.constant 0 : index
    %c0_139 = arith.constant 0 : index
    %c0_140 = arith.constant 0 : index
    %185 = vector.load %arg10[%c0_138, %c0_139, %c0_140] : memref<2x8x1xf32, #tpu.memory_space<vmem>>, vector<1x8x1xf32>
    %186 = vector.shape_cast %185 : vector<1x8x1xf32> to vector<8x1xf32>
    %187 = arith.addf %184, %186 : vector<8x1xf32>
    %c1_141 = arith.constant 1 : index
    %c0_142 = arith.constant 0 : index
    %c0_143 = arith.constant 0 : index
    %188 = vector.load %arg9[%c1_141, %c0_142, %c0_143] : memref<2x8x4xf32, #tpu.memory_space<vmem>>, vector<1x8x4xf32>
    %189 = vector.shape_cast %188 : vector<1x8x4xf32> to vector<8x4xf32>
    %cst_144 = arith.constant dense<0.000000e+00> : vector<8x1xf32>
    %190 = tpu.matmul %189, %181, %cst_144 {dimension_numbers = #tpu.dot_dimension_numbers<[1], [0], [0], [1], [0, 0, 1, 1], [], []>} : vector<8x4xf32>, vector<4x1xf32>, vector<8x1xf32> -> vector<8x1xf32>
    %c1_145 = arith.constant 1 : index
    %c0_146 = arith.constant 0 : index
    %c0_147 = arith.constant 0 : index
    %191 = vector.load %arg10[%c1_145, %c0_146, %c0_147] : memref<2x8x1xf32, #tpu.memory_space<vmem>>, vector<1x8x1xf32>
    %192 = vector.shape_cast %191 : vector<1x8x1xf32> to vector<8x1xf32>
    %193 = arith.addf %190, %192 : vector<8x1xf32>
    %194 = arith.maximumf %187, %193 : vector<8x1xf32>
    %195 = arith.subf %187, %194 : vector<8x1xf32>
    %196 = math.exp %195 : vector<8x1xf32>
    %197 = arith.subf %193, %194 : vector<8x1xf32>
    %198 = math.exp %197 : vector<8x1xf32>
    %199 = arith.addf %196, %198 : vector<8x1xf32>
    %200 = arith.divf %196, %199 : vector<8x1xf32>
    %201 = vector.broadcast %200 : vector<8x1xf32> to vector<8x256xf32>
    %202 = arith.mulf %89, %201 : vector<8x256xf32>
    %203 = arith.divf %198, %199 : vector<8x1xf32>
    %204 = vector.broadcast %203 : vector<8x1xf32> to vector<8x256xf32>
    %205 = arith.mulf %172, %204 : vector<8x256xf32>
    %206 = arith.addf %202, %205 : vector<8x256xf32>
    %c0_148 = arith.constant 0 : index
    %c0_149 = arith.constant 0 : index
    %207 = vector.load %arg11[%c0_148, %c0_149] : memref<16x8xf32, #tpu.memory_space<vmem>>, vector<16x8xf32>
    %cst_150 = arith.constant dense<0.000000e+00> : vector<16x256xf32>
    %208 = tpu.matmul %207, %206, %cst_150 {dimension_numbers = #tpu.dot_dimension_numbers<[1], [0], [0], [1], [0, 0, 1, 1], [], []>} : vector<16x8xf32>, vector<8x256xf32>, vector<16x256xf32> -> vector<16x256xf32>
    %c0_151 = arith.constant 0 : index
    %c0_152 = arith.constant 0 : index
    %209 = vector.load %arg12[%c0_151, %c0_152] : memref<16x1xf32, #tpu.memory_space<vmem>>, vector<16x1xf32>
    %210 = vector.broadcast %209 : vector<16x1xf32> to vector<16x256xf32>
    %211 = arith.addf %208, %210 : vector<16x256xf32>
    %c0_153 = arith.constant 0 : index
    %c0_154 = arith.constant 0 : index
    %212 = vector.load %arg13[%c0_153, %c0_154] : memref<16x8xf32, #tpu.memory_space<vmem>>, vector<16x8xf32>
    %cst_155 = arith.constant dense<0.000000e+00> : vector<16x256xf32>
    %213 = tpu.matmul %212, %1, %cst_155 {dimension_numbers = #tpu.dot_dimension_numbers<[1], [0], [0], [1], [0, 0, 1, 1], [], []>} : vector<16x8xf32>, vector<8x256xf32>, vector<16x256xf32> -> vector<16x256xf32>
    %214 = arith.addf %211, %213 : vector<16x256xf32>
    %c0_156 = arith.constant 0 : index
    %c0_157 = arith.constant 0 : index
    %215 = vector.load %arg14[%c0_156, %c0_157] : memref<16x1xf32, #tpu.memory_space<vmem>>, vector<16x1xf32>
    %216 = vector.broadcast %215 : vector<16x1xf32> to vector<16x256xf32>
    %217 = arith.addf %214, %216 : vector<16x256xf32>
    %c0_158 = arith.constant 0 : index
    %c0_159 = arith.constant 0 : index
    %c0_160 = arith.constant 0 : index
    %218 = vector.load %arg15[%c0_158, %c0_159, %c0_160] : memref<1x16x256xf32, #tpu.memory_space<vmem>>, vector<1x16x256xf32>
    %219 = vector.shape_cast %218 : vector<1x16x256xf32> to vector<16x256xf32>
    %220 = vector.shape_cast %217 : vector<16x256xf32> to vector<1x16x256xf32>
    tpu.vector_store %arg15[%c0_158, %c0_159, %c0_160], %220 {strides = array<i32>} : memref<1x16x256xf32, #tpu.memory_space<vmem>>, vector<1x16x256xf32>,
    return
  }
  func.func @transform_0(%arg0: i32) -> (i32, i32, i32) {
    %c0_i32 = arith.constant 0 : i32
    %c0_i32_0 = arith.constant 0 : i32
    %c0_i32_1 = arith.constant 0 : i32
    return %arg0, %c0_i32, %c0_i32_0 : i32, i32, i32
  }
  func.func @transform_1(%arg0: i32) -> (i32, i32, i32) {
    %c0_i32 = arith.constant 0 : i32
    %c0_i32_0 = arith.constant 0 : i32
    %c0_i32_1 = arith.constant 0 : i32
    %c0_i32_2 = arith.constant 0 : i32
    return %c0_i32, %c0_i32_0, %c0_i32_1 : i32, i32, i32
  }
  func.func @transform_2(%arg0: i32) -> (i32, i32) {
    %c0_i32 = arith.constant 0 : i32
    %c0_i32_0 = arith.constant 0 : i32
    %c0_i32_1 = arith.constant 0 : i32
    return %c0_i32, %c0_i32_0 : i32, i32
  }
  func.func @transform_3(%arg0: i32) -> (i32, i32) {
    %c0_i32 = arith.constant 0 : i32
    %c0_i32_0 = arith.constant 0 : i32
    %c0_i32_1 = arith.constant 0 : i32
    return %c0_i32, %c0_i32_0 : i32, i32
  }
  func.func @transform_4(%arg0: i32) -> (i32, i32, i32) {
    %c0_i32 = arith.constant 0 : i32
    %c0_i32_0 = arith.constant 0 : i32
    %c0_i32_1 = arith.constant 0 : i32
    %c0_i32_2 = arith.constant 0 : i32
    return %c0_i32, %c0_i32_0, %c0_i32_1 : i32, i32, i32
  }
  func.func @transform_5(%arg0: i32) -> (i32, i32, i32) {
    %c0_i32 = arith.constant 0 : i32
    %c0_i32_0 = arith.constant 0 : i32
    %c0_i32_1 = arith.constant 0 : i32
    %c0_i32_2 = arith.constant 0 : i32
    return %c0_i32, %c0_i32_0, %c0_i32_1 : i32, i32, i32
  }
  func.func @transform_6(%arg0: i32) -> (i32, i32) {
    %c0_i32 = arith.constant 0 : i32
    %c0_i32_0 = arith.constant 0 : i32
    %c0_i32_1 = arith.constant 0 : i32
    return %c0_i32, %c0_i32_0 : i32, i32
  }
  func.func @transform_7(%arg0: i32) -> (i32, i32) {
    %c0_i32 = arith.constant 0 : i32
    %c0_i32_0 = arith.constant 0 : i32
    %c0_i32_1 = arith.constant 0 : i32
    return %c0_i32, %c0_i32_0 : i32, i32
  }
  func.func @transform_8(%arg0: i32) -> (i32, i32, i32) {
    %c0_i32 = arith.constant 0 : i32
    %c0_i32_0 = arith.constant 0 : i32
    %c0_i32_1 = arith.constant 0 : i32
    %c0_i32_2 = arith.constant 0 : i32
    return %c0_i32, %c0_i32_0, %c0_i32_1 : i32, i32, i32
  }
  func.func @transform_9(%arg0: i32) -> (i32, i32, i32) {
    %c0_i32 = arith.constant 0 : i32
    %c0_i32_0 = arith.constant 0 : i32
    %c0_i32_1 = arith.constant 0 : i32
    %c0_i32_2 = arith.constant 0 : i32
    return %c0_i32, %c0_i32_0, %c0_i32_1 : i32, i32, i32
  }
  func.func @transform_10(%arg0: i32) -> (i32, i32) {
    %c0_i32 = arith.constant 0 : i32
    %c0_i32_0 = arith.constant 0 : i32
    %c0_i32_1 = arith.constant 0 : i32
    return %c0_i32, %c0_i32_0 : i32, i32
  }
  func.func @transform_11(%arg0: i32) -> (i32, i32) {
    %c0_i32 = arith.constant 0 : i32
    %c0_i32_0 = arith.constant 0 : i32
    %c0_i32_1 = arith.constant 0 : i32
    return %c0_i32, %c0_i32_0 : i32, i32
  }
  func.func @transform_12(%arg0: i32) -> (i32, i32) {
    %c0_i32 = arith.constant 0 : i32
    %c0_i32_0 = arith.constant 0 : i32
    %c0_i32_1 = arith.constant 0 : i32
    return %c0_i32, %c0_i32_0 : i32, i32
  }
  func.func @transform_13(%arg0: i32) -> (i32, i32) {
    %c0_i32 = arith.constant 0 : i32
    %c0_i32_0 = arith.constant 0 : i32
    %c0_i32_1 = arith.constant 0 : i32
    return %c0_i32, %c0_i32_0 : i32, i32
  }
  func.func @transform_14(%arg0: i32) -> (i32, i32, i32) {
    %c0_i32 = arith.constant 0 : i32
    %c0_i32_0 = arith.constant 0 : i32
    %c0_i32_1 = arith.constant 0 : i32
    return %arg0, %c0_i32, %c0_i32_0 : i32, i32, i32
  }
}

</mosaic_0001>

<llo_original>
// kernel: tpu_custom_call.1
$region0: #{tpu_custom_call.1}
  #allocation0 [shape = 'u32[]', space=smem, size = 0x4, offset = 0x4, fixed_abs, tag = 'smem constant byte address 0x4 - core index']
  #allocation1 [shape = 'u32[72,128]{1,0:T(1,128)}', space=vmem, size = 0x9000, scoped, tag = 'internal scratch']
  %s0 = inlined_call_operand.vmem [shape: f32[2,8,256], index: 0, kind: input, shape index: {}]
  %s1 = inlined_call_operand.vmem [shape: f32[9,1,256], index: 1, kind: input, shape index: {}]
  %s2 = inlined_call_operand.vmem [shape: f32[8,8], index: 2, kind: input, shape index: {}]
  %s3 = inlined_call_operand.vmem [shape: f32[8,1], index: 3, kind: input, shape index: {}]
  %s4 = inlined_call_operand.vmem [shape: f32[18,8,8], index: 4, kind: input, shape index: {}]
  %s5 = inlined_call_operand.vmem [shape: f32[2,8,1], index: 5, kind: input, shape index: {}]
  %s6 = inlined_call_operand.vmem [shape: f32[4,8], index: 6, kind: input, shape index: {}]
  %s7 = inlined_call_operand.vmem [shape: f32[4,1], index: 7, kind: input, shape index: {}]
  %s8 = inlined_call_operand.vmem [shape: f32[2,8,4], index: 8, kind: input, shape index: {}]
  %s9 = inlined_call_operand.vmem [shape: f32[2,8,1], index: 9, kind: input, shape index: {}]
  %s10 = inlined_call_operand.vmem [shape: f32[16,8], index: 10, kind: input, shape index: {}]
  %s11 = inlined_call_operand.vmem [shape: f32[16,1], index: 11, kind: input, shape index: {}]
  %s12 = inlined_call_operand.vmem [shape: f32[16,8], index: 12, kind: input, shape index: {}]
  %s13 = inlined_call_operand.vmem [shape: f32[16,1], index: 13, kind: input, shape index: {}]
  %s14 = inlined_call_operand.hbm [shape: f32[2,16,256], index: 14, kind: output, shape index: {}]
  %s15 = sld [smem:[#allocation0]]
  $region89: #{tpu_custom_call.1} parent=0
    _
  %s17 = ssub.s32 1, %s15
  %s18 = scalar_select 0, %s17, %s15
  $region1: #{tpu_custom_call.1} parent=0
    #allocation2 [shape = 'u8[32768]{0}', space=vmem, size = 0x8000, scoped, tag = 'output window, operand 0']
    #allocation3 [shape = 's32[2]{0}', space=sflag, size = 0x8, scoped, tag = 'scoped memory for tpu_custom_call.1']
    %19 = vsyncpa [#allocation3], 0
    %s20 = scalar_lea.sflag [#allocation3], 1
    %21 = vsyncpa %s20, 0
    loop: start=0, step=1, limit=4
    $region2: #{tpu_custom_call.1} parent=1 // loop_pre_header
      _
    $region3: #{tpu_custom_call.1} parent=1 // loop_header
      %s23 = sphi 0, %s27
      %p24 = scmp.ge.s32.totalorder %s23, 4
      %s33 = sphi 0, %s35
      %s36 = sphi 0, %s33
      %s37 = sphi 0, %s36
      %s53 = sphi 0, %s37
      %s57 = sphi 0, %s57
      %s59 = sphi 0, %s57
      %s60 = sphi 0, %s59
      %s74 = sphi 0, %s60
      %s78 = sphi 0, %s78
      %s80 = sphi 0, %s78
      %s81 = sphi 0, %s80
      %s95 = sphi 0, %s81
      %s99 = sphi 0, %s99
      %s101 = sphi 0, %s99
      %s102 = sphi 0, %s101
      %s116 = sphi 0, %s102
      %s120 = sphi 0, %s120
      %s122 = sphi 0, %s120
      %s123 = sphi 0, %s122
      %s137 = sphi 0, %s123
      %s141 = sphi 0, %s141
      %s143 = sphi 0, %s141
      %s144 = sphi 0, %s143
      %s158 = sphi 0, %s144
      %s162 = sphi 0, %s162
      %s164 = sphi 0, %s162
      %s165 = sphi 0, %s164
      %s179 = sphi 0, %s165
      %s183 = sphi 0, %s183
      %s185 = sphi 0, %s183
      %s186 = sphi 0, %s185
      %s200 = sphi 0, %s186
      %s204 = sphi 0, %s204
      %s206 = sphi 0, %s204
      %s207 = sphi 0, %s206
      %s221 = sphi 0, %s207
      %s225 = sphi 0, %s225
      %s227 = sphi 0, %s225
      %s228 = sphi 0, %s227
      %s242 = sphi 0, %s228
      %s246 = sphi 0, %s246
      %s248 = sphi 0, %s246
      %s249 = sphi 0, %s248
      %s263 = sphi 0, %s249
      %s267 = sphi 0, %s267
      %s269 = sphi 0, %s267
      %s270 = sphi 0, %s269
      %s284 = sphi 0, %s270
      %s288 = sphi 0, %s288
      %s290 = sphi 0, %s288
      %s291 = sphi 0, %s290
      %s305 = sphi 0, %s291
      %s309 = sphi 0, %s309
      %s311 = sphi 0, %s309
      %s312 = sphi 0, %s311
      %s326 = sphi 0, %s312
      %s332 = sphi 0, %s334
      %s335 = sphi 0, %s332
      %s336 = sphi 0, %s335
      %s352 = sphi 0, %s336
    $region4: #{tpu_custom_call.1} parent=1 // loop_header_branch
      %26 = sbr.rel (%p24) target = $region8
    $region5: #{tpu_custom_call.1} parent=1 // loop_body
      %s28 = ssub.s32 %s23, 1
      %s29 = ssub.s32 %s23, 2
      %s30 = sadd.s32 %s23, 1
      %s31 = ssub.s32 %s23, %s30
      %p32 = scmp.eq.s32.totalorder %s31, 0
      %s34 = sadd.s32 %s33, 1
      %s35 = scalar_select %p32, %s33, %s34
      %p38 = pneg %p32
      %p39 = scmp.eq.s32.totalorder %s23, 1
      %p40 = por %p38, %p39
      %p41 = scmp.ne.s32.totalorder %s33, %s36
      %p42 = scmp.eq.s32.totalorder %s23, 0
      %p43 = por %p41, %p42
      %p44 = scmp.ne.s32.totalorder %s33, %s36
      %p45 = scmp.eq.s32.totalorder %s28, 1
      %p46 = por %p44, %p45
      %p47 = scmp.ne.s32.totalorder %s36, %s37
      %p48 = scmp.eq.s32.totalorder %s28, 0
      %p49 = por %p47, %p48
      %p50 = scmp.ne.s32.totalorder %s36, %s37
      %p51 = scmp.eq.s32.totalorder %s29, 1
      %p52 = por %p50, %p51
      %p54 = scmp.ne.s32.totalorder %s37, %s53
      %p55 = scmp.eq.s32.totalorder %s29, 0
      %p56 = por %p54, %p55
      %s58 = sadd.s32 %s57, 1
      %p61 = scmp.eq.s32.totalorder %s23, 1
      %p62 = scmp.ne.s32.totalorder %s57, %s59
      %p63 = scmp.eq.s32.totalorder %s23, 0
      %p64 = por %p62, %p63
      %p65 = scmp.ne.s32.totalorder %s57, %s59
      %p66 = scmp.eq.s32.totalorder %s28, 1
      %p67 = por %p65, %p66
      %p68 = scmp.ne.s32.totalorder %s59, %s60
      %p69 = scmp.eq.s32.totalorder %s28, 0
      %p70 = por %p68, %p69
      %p71 = scmp.ne.s32.totalorder %s59, %s60
      %p72 = scmp.eq.s32.totalorder %s29, 1
      %p73 = por %p71, %p72
      %p75 = scmp.ne.s32.totalorder %s60, %s74
      %p76 = scmp.eq.s32.totalorder %s29, 0
      %p77 = por %p75, %p76
      %s79 = sadd.s32 %s78, 1
      %p82 = scmp.eq.s32.totalorder %s23, 1
      %p83 = scmp.ne.s32.totalorder %s78, %s80
      %p84 = scmp.eq.s32.totalorder %s23, 0
      %p85 = por %p83, %p84
      %p86 = scmp.ne.s32.totalorder %s78, %s80
      %p87 = scmp.eq.s32.totalorder %s28, 1
      %p88 = por %p86, %p87
      %p89 = scmp.ne.s32.totalorder %s80, %s81
      %p90 = scmp.eq.s32.totalorder %s28, 0
      %p91 = por %p89, %p90
      %p92 = scmp.ne.s32.totalorder %s80, %s81
      %p93 = scmp.eq.s32.totalorder %s29, 1
      %p94 = por %p92, %p93
      %p96 = scmp.ne.s32.totalorder %s81, %s95
      %p97 = scmp.eq.s32.totalorder %s29, 0
      %p98 = por %p96, %p97
      %s100 = sadd.s32 %s99, 1
      %p103 = scmp.eq.s32.totalorder %s23, 1
      %p104 = scmp.ne.s32.totalorder %s99, %s101
      %p105 = scmp.eq.s32.totalorder %s23, 0
      %p106 = por %p104, %p105
      %p107 = scmp.ne.s32.totalorder %s99, %s101
      %p108 = scmp.eq.s32.totalorder %s28, 1
      %p109 = por %p107, %p108
      %p110 = scmp.ne.s32.totalorder %s101, %s102
      %p111 = scmp.eq.s32.totalorder %s28, 0
      %p112 = por %p110, %p111
      %p113 = scmp.ne.s32.totalorder %s101, %s102
      %p114 = scmp.eq.s32.totalorder %s29, 1
      %p115 = por %p113, %p114
      %p117 = scmp.ne.s32.totalorder %s102, %s116
      %p118 = scmp.eq.s32.totalorder %s29, 0
      %p119 = por %p117, %p118
      %s121 = sadd.s32 %s120, 1
      %p124 = scmp.eq.s32.totalorder %s23, 1
      %p125 = scmp.ne.s32.totalorder %s120, %s122
      %p126 = scmp.eq.s32.totalorder %s23, 0
      %p127 = por %p125, %p126
      %p128 = scmp.ne.s32.totalorder %s120, %s122
      %p129 = scmp.eq.s32.totalorder %s28, 1
      %p130 = por %p128, %p129
      %p131 = scmp.ne.s32.totalorder %s122, %s123
      %p132 = scmp.eq.s32.totalorder %s28, 0
      %p133 = por %p131, %p132
      %p134 = scmp.ne.s32.totalorder %s122, %s123
      %p135 = scmp.eq.s32.totalorder %s29, 1
      %p136 = por %p134, %p135
      %p138 = scmp.ne.s32.totalorder %s123, %s137
      %p139 = scmp.eq.s32.totalorder %s29, 0
      %p140 = por %p138, %p139
      %s142 = sadd.s32 %s141, 1
      %p145 = scmp.eq.s32.totalorder %s23, 1
      %p146 = scmp.ne.s32.totalorder %s141, %s143
      %p147 = scmp.eq.s32.totalorder %s23, 0
      %p148 = por %p146, %p147
      %p149 = scmp.ne.s32.totalorder %s141, %s143
      %p150 = scmp.eq.s32.totalorder %s28, 1
      %p151 = por %p149, %p150
      %p152 = scmp.ne.s32.totalorder %s143, %s144
      %p153 = scmp.eq.s32.totalorder %s28, 0
      %p154 = por %p152, %p153
      %p155 = scmp.ne.s32.totalorder %s143, %s144
      %p156 = scmp.eq.s32.totalorder %s29, 1
      %p157 = por %p155, %p156
      %p159 = scmp.ne.s32.totalorder %s144, %s158
      %p160 = scmp.eq.s32.totalorder %s29, 0
      %p161 = por %p159, %p160
      %s163 = sadd.s32 %s162, 1
      %p166 = scmp.eq.s32.totalorder %s23, 1
      %p167 = scmp.ne.s32.totalorder %s162, %s164
      %p168 = scmp.eq.s32.totalorder %s23, 0
      %p169 = por %p167, %p168
      %p170 = scmp.ne.s32.totalorder %s162, %s164
      %p171 = scmp.eq.s32.totalorder %s28, 1
      %p172 = por %p170, %p171
      %p173 = scmp.ne.s32.totalorder %s164, %s165
      %p174 = scmp.eq.s32.totalorder %s28, 0
      %p175 = por %p173, %p174
      %p176 = scmp.ne.s32.totalorder %s164, %s165
      %p177 = scmp.eq.s32.totalorder %s29, 1
      %p178 = por %p176, %p177
      %p180 = scmp.ne.s32.totalorder %s165, %s179
      %p181 = scmp.eq.s32.totalorder %s29, 0
      %p182 = por %p180, %p181
      %s184 = sadd.s32 %s183, 1
      %p187 = scmp.eq.s32.totalorder %s23, 1
      %p188 = scmp.ne.s32.totalorder %s183, %s185
      %p189 = scmp.eq.s32.totalorder %s23, 0
      %p190 = por %p188, %p189
      %p191 = scmp.ne.s32.totalorder %s183, %s185
      %p192 = scmp.eq.s32.totalorder %s28, 1
      %p193 = por %p191, %p192
      %p194 = scmp.ne.s32.totalorder %s185, %s186
      %p195 = scmp.eq.s32.totalorder %s28, 0
      %p196 = por %p194, %p195
      %p197 = scmp.ne.s32.totalorder %s185, %s186
      %p198 = scmp.eq.s32.totalorder %s29, 1
      %p199 = por %p197, %p198
      %p201 = scmp.ne.s32.totalorder %s186, %s200
      %p202 = scmp.eq.s32.totalorder %s29, 0
      %p203 = por %p201, %p202
      %s205 = sadd.s32 %s204, 1
      %p208 = scmp.eq.s32.totalorder %s23, 1
      %p209 = scmp.ne.s32.totalorder %s204, %s206
      %p210 = scmp.eq.s32.totalorder %s23, 0
      %p211 = por %p209, %p210
      %p212 = scmp.ne.s32.totalorder %s204, %s206
      %p213 = scmp.eq.s32.totalorder %s28, 1
      %p214 = por %p212, %p213
      %p215 = scmp.ne.s32.totalorder %s206, %s207
      %p216 = scmp.eq.s32.totalorder %s28, 0
      %p217 = por %p215, %p216
      %p218 = scmp.ne.s32.totalorder %s206, %s207
      %p219 = scmp.eq.s32.totalorder %s29, 1
      %p220 = por %p218, %p219
      %p222 = scmp.ne.s32.totalorder %s207, %s221
      %p223 = scmp.eq.s32.totalorder %s29, 0
      %p224 = por %p222, %p223
      %s226 = sadd.s32 %s225, 1
      %p229 = scmp.eq.s32.totalorder %s23, 1
      %p230 = scmp.ne.s32.totalorder %s225, %s227
      %p231 = scmp.eq.s32.totalorder %s23, 0
      %p232 = por %p230, %p231
      %p233 = scmp.ne.s32.totalorder %s225, %s227
      %p234 = scmp.eq.s32.totalorder %s28, 1
      %p235 = por %p233, %p234
      %p236 = scmp.ne.s32.totalorder %s227, %s228
      %p237 = scmp.eq.s32.totalorder %s28, 0
      %p238 = por %p236, %p237
      %p239 = scmp.ne.s32.totalorder %s227, %s228
      %p240 = scmp.eq.s32.totalorder %s29, 1
      %p241 = por %p239, %p240
      %p243 = scmp.ne.s32.totalorder %s228, %s242
      %p244 = scmp.eq.s32.totalorder %s29, 0
      %p245 = por %p243, %p244
      %s247 = sadd.s32 %s246, 1
      %p250 = scmp.eq.s32.totalorder %s23, 1
      %p251 = scmp.ne.s32.totalorder %s246, %s248
      %p252 = scmp.eq.s32.totalorder %s23, 0
      %p253 = por %p251, %p252
      %p254 = scmp.ne.s32.totalorder %s246, %s248
      %p255 = scmp.eq.s32.totalorder %s28, 1
      %p256 = por %p254, %p255
      %p257 = scmp.ne.s32.totalorder %s248, %s249
      %p258 = scmp.eq.s32.totalorder %s28, 0
      %p259 = por %p257, %p258
      %p260 = scmp.ne.s32.totalorder %s248, %s249
      %p261 = scmp.eq.s32.totalorder %s29, 1
      %p262 = por %p260, %p261
      %p264 = scmp.ne.s32.totalorder %s249, %s263
      %p265 = scmp.eq.s32.totalorder %s29, 0
      %p266 = por %p264, %p265
      %s268 = sadd.s32 %s267, 1
      %p271 = scmp.eq.s32.totalorder %s23, 1
      %p272 = scmp.ne.s32.totalorder %s267, %s269
      %p273 = scmp.eq.s32.totalorder %s23, 0
      %p274 = por %p272, %p273
      %p275 = scmp.ne.s32.totalorder %s267, %s269
      %p276 = scmp.eq.s32.totalorder %s28, 1
      %p277 = por %p275, %p276
      %p278 = scmp.ne.s32.totalorder %s269, %s270
      %p279 = scmp.eq.s32.totalorder %s28, 0
      %p280 = por %p278, %p279
      %p281 = scmp.ne.s32.totalorder %s269, %s270
      %p282 = scmp.eq.s32.totalorder %s29, 1
      %p283 = por %p281, %p282
      %p285 = scmp.ne.s32.totalorder %s270, %s284
      %p286 = scmp.eq.s32.totalorder %s29, 0
      %p287 = por %p285, %p286
      %s289 = sadd.s32 %s288, 1
      %p292 = scmp.eq.s32.totalorder %s23, 1
      %p293 = scmp.ne.s32.totalorder %s288, %s290
      %p294 = scmp.eq.s32.totalorder %s23, 0
      %p295 = por %p293, %p294
      %p296 = scmp.ne.s32.totalorder %s288, %s290
      %p297 = scmp.eq.s32.totalorder %s28, 1
      %p298 = por %p296, %p297
      %p299 = scmp.ne.s32.totalorder %s290, %s291
      %p300 = scmp.eq.s32.totalorder %s28, 0
      %p301 = por %p299, %p300
      %p302 = scmp.ne.s32.totalorder %s290, %s291
      %p303 = scmp.eq.s32.totalorder %s29, 1
      %p304 = por %p302, %p303
      %p306 = scmp.ne.s32.totalorder %s291, %s305
      %p307 = scmp.eq.s32.totalorder %s29, 0
      %p308 = por %p306, %p307
      %s310 = sadd.s32 %s309, 1
      %p313 = scmp.eq.s32.totalorder %s23, 1
      %p314 = scmp.ne.s32.totalorder %s309, %s311
      %p315 = scmp.eq.s32.totalorder %s23, 0
      %p316 = por %p314, %p315
      %p317 = scmp.ne.s32.totalorder %s309, %s311
      %p318 = scmp.eq.s32.totalorder %s28, 1
      %p319 = por %p317, %p318
      %p320 = scmp.ne.s32.totalorder %s311, %s312
      %p321 = scmp.eq.s32.totalorder %s28, 0
      %p322 = por %p320, %p321
      %p323 = scmp.ne.s32.totalorder %s311, %s312
      %p324 = scmp.eq.s32.totalorder %s29, 1
      %p325 = por %p323, %p324
      %p327 = scmp.ne.s32.totalorder %s312, %s326
      %p328 = scmp.eq.s32.totalorder %s29, 0
      %p329 = por %p327, %p328
      %s330 = ssub.s32 %s23, %s30
      %p331 = scmp.eq.s32.totalorder %s330, 0
      %s333 = sadd.s32 %s332, 1
      %s334 = scalar_select %p331, %s332, %s333
      %p337 = pneg %p331
      %p338 = scmp.eq.s32.totalorder %s23, 1
      %p339 = por %p337, %p338
      %p340 = scmp.ne.s32.totalorder %s332, %s335
      %p341 = scmp.eq.s32.totalorder %s23, 0
      %p342 = por %p340, %p341
      %p343 = scmp.ne.s32.totalorder %s332, %s335
      %p344 = scmp.eq.s32.totalorder %s28, 1
      %p345 = por %p343, %p344
      %p346 = scmp.ne.s32.totalorder %s335, %s336
      %p347 = scmp.eq.s32.totalorder %s28, 0
      %p348 = por %p346, %p347
      %p349 = scmp.ne.s32.totalorder %s335, %s336
      %p350 = scmp.eq.s32.totalorder %s29, 1
      %p351 = por %p349, %p350
      %p353 = scmp.ne.s32.totalorder %s336, %s352
      %p354 = scmp.eq.s32.totalorder %s29, 0
      %p355 = por %p353, %p354
      %p356 = scmp.le.s32.totalorder 1, %s23
      %p357 = scmp.lt.s32.totalorder %s23, 3
      %p358 = pnand %p356, %p357
      %p359 = pneg %p358
      // Predicated region
      $region9: #{tpu_custom_call.1} parent=5 // pred_check
        _
      $region10: #{tpu_custom_call.1} parent=5 // pred_check_branch
        %361 = sbr.rel (%p358) target = $region12
      $region11: #{tpu_custom_call.1} parent=5 // pred_region
        %s362 = ssub.s32 %s23, 1
        // Predicated region
        $region13: #{tpu_custom_call.1} parent=11 // pred_check
          %p363 = pneg %p70
        $region14: #{tpu_custom_call.1} parent=11 // pred_check_branch
          %365 = sbr.rel (%p363) target = $region16
        $region15: #{tpu_custom_call.1} parent=11 // pred_region
          _
        $region16: #{tpu_custom_call.1} parent=11 // pred_fallthru
          _
        // Predicated region
        $region17: #{tpu_custom_call.1} parent=11 // pred_check
          %p366 = pneg %p91
        $region18: #{tpu_custom_call.1} parent=11 // pred_check_branch
          %368 = sbr.rel (%p366) target = $region20
        $region19: #{tpu_custom_call.1} parent=11 // pred_region
          _
        $region20: #{tpu_custom_call.1} parent=11 // pred_fallthru
          _
        // Predicated region
        $region21: #{tpu_custom_call.1} parent=11 // pred_check
          %p369 = pneg %p112
        $region22: #{tpu_custom_call.1} parent=11 // pred_check_branch
          %371 = sbr.rel (%p369) target = $region24
        $region23: #{tpu_custom_call.1} parent=11 // pred_region
          _
        $region24: #{tpu_custom_call.1} parent=11 // pred_fallthru
          _
        // Predicated region
        $region25: #{tpu_custom_call.1} parent=11 // pred_check
          %p372 = pneg %p133
        $region26: #{tpu_custom_call.1} parent=11 // pred_check_branch
          %374 = sbr.rel (%p372) target = $region28
        $region27: #{tpu_custom_call.1} parent=11 // pred_region
          _
        $region28: #{tpu_custom_call.1} parent=11 // pred_fallthru
          _
        // Predicated region
        $region29: #{tpu_custom_call.1} parent=11 // pred_check
          %p375 = pneg %p154
        $region30: #{tpu_custom_call.1} parent=11 // pred_check_branch
          %377 = sbr.rel (%p375) target = $region32
        $region31: #{tpu_custom_call.1} parent=11 // pred_region
          _
        $region32: #{tpu_custom_call.1} parent=11 // pred_fallthru
          _
        // Predicated region
        $region33: #{tpu_custom_call.1} parent=11 // pred_check
          %p378 = pneg %p175
        $region34: #{tpu_custom_call.1} parent=11 // pred_check_branch
          %380 = sbr.rel (%p378) target = $region36
        $region35: #{tpu_custom_call.1} parent=11 // pred_region
          _
        $region36: #{tpu_custom_call.1} parent=11 // pred_fallthru
          _
        // Predicated region
        $region37: #{tpu_custom_call.1} parent=11 // pred_check
          %p381 = pneg %p196
        $region38: #{tpu_custom_call.1} parent=11 // pred_check_branch
          %383 = sbr.rel (%p381) target = $region40
        $region39: #{tpu_custom_call.1} parent=11 // pred_region
          _
        $region40: #{tpu_custom_call.1} parent=11 // pred_fallthru
          _
        // Predicated region
        $region41: #{tpu_custom_call.1} parent=11 // pred_check
          %p384 = pneg %p217
        $region42: #{tpu_custom_call.1} parent=11 // pred_check_branch
          %386 = sbr.rel (%p384) target = $region44
        $region43: #{tpu_custom_call.1} parent=11 // pred_region
          _
        $region44: #{tpu_custom_call.1} parent=11 // pred_fallthru
          _
        // Predicated region
        $region45: #{tpu_custom_call.1} parent=11 // pred_check
          %p387 = pneg %p238
        $region46: #{tpu_custom_call.1} parent=11 // pred_check_branch
          %389 = sbr.rel (%p387) target = $region48
        $region47: #{tpu_custom_call.1} parent=11 // pred_region
          _
        $region48: #{tpu_custom_call.1} parent=11 // pred_fallthru
          _
        // Predicated region
        $region49: #{tpu_custom_call.1} parent=11 // pred_check
          %p390 = pneg %p259
        $region50: #{tpu_custom_call.1} parent=11 // pred_check_branch
          %392 = sbr.rel (%p390) target = $region52
        $region51: #{tpu_custom_call.1} parent=11 // pred_region
          _
        $region52: #{tpu_custom_call.1} parent=11 // pred_fallthru
          _
        // Predicated region
        $region53: #{tpu_custom_call.1} parent=11 // pred_check
          %p393 = pneg %p280
        $region54: #{tpu_custom_call.1} parent=11 // pred_check_branch
          %395 = sbr.rel (%p393) target = $region56
        $region55: #{tpu_custom_call.1} parent=11 // pred_region
          _
        $region56: #{tpu_custom_call.1} parent=11 // pred_fallthru
          _
        // Predicated region
        $region57: #{tpu_custom_call.1} parent=11 // pred_check
          %p396 = pneg %p301
        $region58: #{tpu_custom_call.1} parent=11 // pred_check_branch
          %398 = sbr.rel (%p396) target = $region60
        $region59: #{tpu_custom_call.1} parent=11 // pred_region
          _
        $region60: #{tpu_custom_call.1} parent=11 // pred_fallthru
          _
        // Predicated region
        $region61: #{tpu_custom_call.1} parent=11 // pred_check
          %p399 = pneg %p322
        $region62: #{tpu_custom_call.1} parent=11 // pred_check_branch
          %401 = sbr.rel (%p399) target = $region64
        $region63: #{tpu_custom_call.1} parent=11 // pred_region
          _
        $region64: #{tpu_custom_call.1} parent=11 // pred_fallthru
          _
      $region12: #{tpu_custom_call.1} parent=5 // pred_fallthru
        _
      %p402 = scmp.lt.s32.totalorder %s23, 2
      // Predicated region
      $region65: #{tpu_custom_call.1} parent=5 // pred_check
        %p403 = pneg %p402
      $region66: #{tpu_custom_call.1} parent=5 // pred_check_branch
        %405 = sbr.rel (%p403) target = $region68
      $region67: #{tpu_custom_call.1} parent=5 // pred_region
        // Predicated region
        $region69: #{tpu_custom_call.1} parent=67 // pred_check
          %p406 = pneg %p43
        $region70: #{tpu_custom_call.1} parent=67 // pred_check_branch
          %408 = sbr.rel (%p406) target = $region72
        $region71: #{tpu_custom_call.1} parent=67 // pred_region
          %p409 = scmp.lt.s32.totalorder %s23, 1
          %s410 = scalar_select %p409, %s23, 1
          %s411 = smul.addr %s410, 2
          %s412 = smul.addr %s411, 8
          %s413 = scalar_lea.vmem %s0, %s412
        $region72: #{tpu_custom_call.1} parent=67 // pred_fallthru
          _
      $region68: #{tpu_custom_call.1} parent=5 // pred_fallthru
        _
      %p414 = scmp.le.s32.totalorder 1, %s23
      %p415 = scmp.lt.s32.totalorder %s23, 3
      %p416 = pnand %p414, %p415
      %p417 = pneg %p416
      // Predicated region
      $region73: #{tpu_custom_call.1} parent=5 // pred_check
        _
      $region74: #{tpu_custom_call.1} parent=5 // pred_check_branch
        %419 = sbr.rel (%p416) target = $region76
      $region75: #{tpu_custom_call.1} parent=5 // pred_region
        %s420 = ssub.s32 %s23, 1
        %p421 = scmp.lt.s32.totalorder %s28, 1
        %s422 = scalar_select %p421, %s28, 1
        %s423 = smul.addr %s422, 2
        %s424 = smul.addr %s423, 8
        %s425 = scalar_lea.vmem %s0, %s424
        %p426 = pneg %p49
        %p427 = pneg %p46
        %p428 = pneg %p70
        %p429 = pneg %p67
        %p430 = pneg %p91
        %p431 = pneg %p88
        %p432 = pneg %p112
        %p433 = pneg %p109
        %p434 = pneg %p133
        %p435 = pneg %p130
        %p436 = pneg %p154
        %p437 = pneg %p151
        %p438 = pneg %p175
        %p439 = pneg %p172
        %p440 = pneg %p196
        %p441 = pneg %p193
        %p442 = pneg %p217
        %p443 = pneg %p214
        %p444 = pneg %p238
        %p445 = pneg %p235
        %p446 = pneg %p259
        %p447 = pneg %p256
        %p448 = pneg %p280
        %p449 = pneg %p277
        %p450 = pneg %p301
        %p451 = pneg %p298
        %p452 = pneg %p322
        %p453 = pneg %p319
        %p454 = pneg %p348
        %p455 = pneg %p345
        %s456 = sand.u32 %s335, 1
        %s457 = scalar_lea.sflag [#allocation3], %s456
        %s458 = sand.u32 %s335, 1
        %s459 = smul.addr %s458, 32
        %s460 = scalar_lea.vmem [#allocation2], %s459
        %p461 = scmp.lt.s32.totalorder %s28, 1
        %s462 = scalar_select %p461, %s28, 1
        %s463 = smul.addr %s462, 2
        %s464 = smul.addr %s463, 8
        %s465 = scalar_lea.vmem %s0, %s464
        %v466 = vld [vmem:[%s465] sm:$0xff]
        %v467 = vld [vmem:[%s465 + $0x8] sm:$0xff]
        %v468 = vld [vmem:[%s2] sm:$0xff]
        %v469 = vld [vmem:[%s3] sm:$0xff]
        %471 = vset.pattern.permute.xlu0 0
        %472 = vperm.xlu0 %471, %v469
        %v473 = vpop.permute.xlu0 %472
        %vm475 = vcmask 64512
        %v477 = vsel %vm475, %v468, 0
        %479 = vmatpush.msra.mxu0 0.0
        %480 = vmatpush.msra.mxu0 0.0
        %481 = vmatpush.msra.mxu0 0.0
        %482 = vmatpush.msra.mxu0 0.0
        %483 = vmatpush.msra.mxu0 0.0
        %484 = vmatpush.msra.mxu0 0.0
        %485 = vmatpush.msra.mxu0 0.0
        %486 = vmatpush.msra.mxu0 0.0
        %487 = vmatpush.msra.mxu0 0.0
        %488 = vmatpush.msra.mxu0 0.0
        %489 = vmatpush.msra.mxu0 0.0
        %490 = vmatpush.msra.mxu0 0.0
        %491 = vmatpush.msra.mxu0 0.0
        %492 = vmatpush.msra.mxu0 0.0
        %493 = vmatpush.msra.mxu0 0.0
        %494 = vmatpush.msra.mxu0 %v466
        %495 = vmatmul.f32.gmra.mxu0 %v477
        %v496 = vpop.f32.mrf.mxu0
        %v497 = vadd.f32 %v473, %v496
        %498 = vdwg.mxu0
        %499 = vmatpush.msra.mxu0 0.0
        %500 = vmatpush.msra.mxu0 0.0
        %501 = vmatpush.msra.mxu0 0.0
        %502 = vmatpush.msra.mxu0 0.0
        %503 = vmatpush.msra.mxu0 0.0
        %504 = vmatpush.msra.mxu0 0.0
        %505 = vmatpush.msra.mxu0 0.0
        %506 = vmatpush.msra.mxu0 0.0
        %507 = vmatpush.msra.mxu0 0.0
        %508 = vmatpush.msra.mxu0 0.0
        %509 = vmatpush.msra.mxu0 0.0
        %510 = vmatpush.msra.mxu0 0.0
        %511 = vmatpush.msra.mxu0 0.0
        %512 = vmatpush.msra.mxu0 0.0
        %513 = vmatpush.msra.mxu0 0.0
        %514 = vmatpush.msra.mxu0 %v467
        %515 = vmatmul.f32.gmra.mxu0 %v477
        %v516 = vpop.f32.mrf.mxu0
        %v517 = vadd.f32 %v473, %v516
        %518 = vdwg.mxu0
        %519 = vrot.lane.b32.xlu0 %v497, 17
        %v520 = vpop.permute.xlu0 %519
        %521 = vrot.lane.b32.xlu0 %v517, 17
        %v522 = vpop.permute.xlu0 %521
        %v523 = vlaneseq
        %v524 = vand.u32 %v523, 127
        %vm525 = vcmp.lt.s32.totalorder %v524, 17
        %v526 = vsel %vm525, %v520, %v522
        %v527 = vsel %vm525, %v522, %v520
        %v528 = vld [vmem:[%s1] sm:$0x3]
        %v530 = vperm.slane %v528, 0
        %v531 = vperm.slane %v528, 1
        %v534 = vmul.f32 %v527, %v530
        %v535 = vmul.f32 %v526, %v531
        %v536 = vld [vmem:[%s4] sm:$0xff]
        %537 = vrot.lane.b32.xlu0 %v497, 16
        %v538 = vpop.permute.xlu0 %537
        %539 = vrot.lane.b32.xlu0 %v517, 16
        %v540 = vpop.permute.xlu0 %539
        %vm541 = vcmp.lt.s32.totalorder %v524, 16
        %v542 = vsel %vm541, %v538, %v540
        %v543 = vsel %vm541, %v540, %v538
        %s544 = scalar_lea.vmem %s1, 2
        %v545 = vld [vmem:[%s544] sm:$0x3]
        %v547 = vperm.slane %v545, 0
        %v548 = vperm.slane %v545, 1
        %v551 = vmul.f32 %v543, %v547
        %v552 = vmul.f32 %v542, %v548
        %s553 = scalar_lea.vmem %s4, 8
        %v554 = vld [vmem:[%s553] sm:$0xff]
        %v556 = vsel %vm475, %v554, 0
        %558 = vmatpush.msra.mxu0 0.0
        %559 = vmatpush.msra.mxu0 0.0
        %560 = vmatpush.msra.mxu0 0.0
        %561 = vmatpush.msra.mxu0 0.0
        %562 = vmatpush.msra.mxu0 0.0
        %563 = vmatpush.msra.mxu0 0.0
        %564 = vmatpush.msra.mxu0 0.0
        %565 = vmatpush.msra.mxu0 0.0
        %566 = vmatpush.msra.mxu0 0.0
        %567 = vmatpush.msra.mxu0 0.0
        %568 = vmatpush.msra.mxu0 0.0
        %569 = vmatpush.msra.mxu0 0.0
        %570 = vmatpush.msra.mxu0 0.0
        %571 = vmatpush.msra.mxu0 0.0
        %572 = vmatpush.msra.mxu0 0.0
        %573 = vmatpush.msra.mxu0 %v551
        %574 = vmatmul.f32.gmra.mxu0 %v556
        %v575 = vpop.f32.mrf.mxu0
        %v576 = vadd.f32 0.0, %v575
        %577 = vdwg.mxu0
        %578 = vmatpush.msra.mxu0 0.0
        %579 = vmatpush.msra.mxu0 0.0
        %580 = vmatpush.msra.mxu0 0.0
        %581 = vmatpush.msra.mxu0 0.0
        %582 = vmatpush.msra.mxu0 0.0
        %583 = vmatpush.msra.mxu0 0.0
        %584 = vmatpush.msra.mxu0 0.0
        %585 = vmatpush.msra.mxu0 0.0
        %586 = vmatpush.msra.mxu0 0.0
        %587 = vmatpush.msra.mxu0 0.0
        %588 = vmatpush.msra.mxu0 0.0
        %589 = vmatpush.msra.mxu0 0.0
        %590 = vmatpush.msra.mxu0 0.0
        %591 = vmatpush.msra.mxu0 0.0
        %592 = vmatpush.msra.mxu0 0.0
        %593 = vmatpush.msra.mxu0 %v552
        %594 = vmatmul.f32.gmra.mxu0 %v556
        %v595 = vpop.f32.mrf.mxu0
        %v596 = vadd.f32 0.0, %v595
        %597 = vdwg.mxu0
        %v599 = vsel %vm475, %v536, 0
        %601 = vmatpush.msra.mxu0 0.0
        %602 = vmatpush.msra.mxu0 0.0
        %603 = vmatpush.msra.mxu0 0.0
        %604 = vmatpush.msra.mxu0 0.0
        %605 = vmatpush.msra.mxu0 0.0
        %606 = vmatpush.msra.mxu0 0.0
        %607 = vmatpush.msra.mxu0 0.0
        %608 = vmatpush.msra.mxu0 0.0
        %609 = vmatpush.msra.mxu0 0.0
        %610 = vmatpush.msra.mxu0 0.0
        %611 = vmatpush.msra.mxu0 0.0
        %612 = vmatpush.msra.mxu0 0.0
        %613 = vmatpush.msra.mxu0 0.0
        %614 = vmatpush.msra.mxu0 0.0
        %615 = vmatpush.msra.mxu0 0.0
        %616 = vmatpush.msra.mxu0 %v534
        %617 = vmatmul.f32.gmra.mxu0 %v599
        %v618 = vpop.f32.mrf.mxu0
        %v619 = vadd.f32 %v576, %v618
        %620 = vdwg.mxu0
        %621 = vmatpush.msra.mxu0 0.0
        %622 = vmatpush.msra.mxu0 0.0
        %623 = vmatpush.msra.mxu0 0.0
        %624 = vmatpush.msra.mxu0 0.0
        %625 = vmatpush.msra.mxu0 0.0
        %626 = vmatpush.msra.mxu0 0.0
        %627 = vmatpush.msra.mxu0 0.0
        %628 = vmatpush.msra.mxu0 0.0
        %629 = vmatpush.msra.mxu0 0.0
        %630 = vmatpush.msra.mxu0 0.0
        %631 = vmatpush.msra.mxu0 0.0
        %632 = vmatpush.msra.mxu0 0.0
        %633 = vmatpush.msra.mxu0 0.0
        %634 = vmatpush.msra.mxu0 0.0
        %635 = vmatpush.msra.mxu0 0.0
        %636 = vmatpush.msra.mxu0 %v535
        %637 = vmatmul.f32.gmra.mxu0 %v599
        %v638 = vpop.f32.mrf.mxu0
        %v639 = vadd.f32 %v596, %v638
        %640 = vdwg.mxu0
        %641 = vrot.lane.b32.xlu0 %v497, 15
        %v642 = vpop.permute.xlu0 %641
        %643 = vrot.lane.b32.xlu0 %v517, 15
        %v644 = vpop.permute.xlu0 %643
        %vm645 = vcmp.lt.s32.totalorder %v524, 15
        %v646 = vsel %vm645, %v642, %v644
        %v647 = vsel %vm645, %v644, %v642
        %s648 = scalar_lea.vmem %s1, 4
        %v649 = vld [vmem:[%s648] sm:$0x3]
        %v651 = vperm.slane %v649, 0
        %v652 = vperm.slane %v649, 1
        %v655 = vmul.f32 %v647, %v651
        %v656 = vmul.f32 %v646, %v652
        %s657 = scalar_lea.vmem %s4, 16
        %v658 = vld [vmem:[%s657] sm:$0xff]
        %v660 = vsel %vm475, %v658, 0
        %662 = vmatpush.msra.mxu0 0.0
        %663 = vmatpush.msra.mxu0 0.0
        %664 = vmatpush.msra.mxu0 0.0
        %665 = vmatpush.msra.mxu0 0.0
        %666 = vmatpush.msra.mxu0 0.0
        %667 = vmatpush.msra.mxu0 0.0
        %668 = vmatpush.msra.mxu0 0.0
        %669 = vmatpush.msra.mxu0 0.0
        %670 = vmatpush.msra.mxu0 0.0
        %671 = vmatpush.msra.mxu0 0.0
        %672 = vmatpush.msra.mxu0 0.0
        %673 = vmatpush.msra.mxu0 0.0
        %674 = vmatpush.msra.mxu0 0.0
        %675 = vmatpush.msra.mxu0 0.0
        %676 = vmatpush.msra.mxu0 0.0
        %677 = vmatpush.msra.mxu0 %v655
        %678 = vmatmul.f32.gmra.mxu0 %v660
        %v679 = vpop.f32.mrf.mxu0
        %v680 = vadd.f32 0.0, %v679
        %681 = vdwg.mxu0
        %682 = vmatpush.msra.mxu0 0.0
        %683 = vmatpush.msra.mxu0 0.0
        %684 = vmatpush.msra.mxu0 0.0
        %685 = vmatpush.msra.mxu0 0.0
        %686 = vmatpush.msra.mxu0 0.0
        %687 = vmatpush.msra.mxu0 0.0
        %688 = vmatpush.msra.mxu0 0.0
        %689 = vmatpush.msra.mxu0 0.0
        %690 = vmatpush.msra.mxu0 0.0
        %691 = vmatpush.msra.mxu0 0.0
        %692 = vmatpush.msra.mxu0 0.0
        %693 = vmatpush.msra.mxu0 0.0
        %694 = vmatpush.msra.mxu0 0.0
        %695 = vmatpush.msra.mxu0 0.0
        %696 = vmatpush.msra.mxu0 0.0
        %697 = vmatpush.msra.mxu0 %v656
        %698 = vmatmul.f32.gmra.mxu0 %v660
        %v699 = vpop.f32.mrf.mxu0
        %v700 = vadd.f32 0.0, %v699
        %701 = vdwg.mxu0
        %v702 = vadd.f32 %v619, %v680
        %v703 = vadd.f32 %v639, %v700
        %704 = vrot.lane.b32.xlu0 %v497, 1
        %v705 = vpop.permute.xlu0 %704
        %706 = vrot.lane.b32.xlu0 %v517, 1
        %v707 = vpop.permute.xlu0 %706
        %vm708 = vcmp.lt.s32.totalorder %v524, 1
        %v709 = vsel %vm708, %v705, %v707
        %v710 = vsel %vm708, %v707, %v705
        %s711 = scalar_lea.vmem %s1, 6
        %v712 = vld [vmem:[%s711] sm:$0x3]
        %v714 = vperm.slane %v712, 0
        %v715 = vperm.slane %v712, 1
        %v718 = vmul.f32 %v710, %v714
        %v719 = vmul.f32 %v709, %v715
        %s720 = scalar_lea.vmem %s4, 24
        %v721 = vld [vmem:[%s720] sm:$0xff]
        %v723 = vsel %vm475, %v721, 0
        %725 = vmatpush.msra.mxu0 0.0
        %726 = vmatpush.msra.mxu0 0.0
        %727 = vmatpush.msra.mxu0 0.0
        %728 = vmatpush.msra.mxu0 0.0
        %729 = vmatpush.msra.mxu0 0.0
        %730 = vmatpush.msra.mxu0 0.0
        %731 = vmatpush.msra.mxu0 0.0
        %732 = vmatpush.msra.mxu0 0.0
        %733 = vmatpush.msra.mxu0 0.0
        %734 = vmatpush.msra.mxu0 0.0
        %735 = vmatpush.msra.mxu0 0.0
        %736 = vmatpush.msra.mxu0 0.0
        %737 = vmatpush.msra.mxu0 0.0
        %738 = vmatpush.msra.mxu0 0.0
        %739 = vmatpush.msra.mxu0 0.0
        %740 = vmatpush.msra.mxu0 %v718
        %741 = vmatmul.f32.gmra.mxu0 %v723
        %v742 = vpop.f32.mrf.mxu0
        %v743 = vadd.f32 0.0, %v742
        %744 = vdwg.mxu0
        %745 = vmatpush.msra.mxu0 0.0
        %746 = vmatpush.msra.mxu0 0.0
        %747 = vmatpush.msra.mxu0 0.0
        %748 = vmatpush.msra.mxu0 0.0
        %749 = vmatpush.msra.mxu0 0.0
        %750 = vmatpush.msra.mxu0 0.0
        %751 = vmatpush.msra.mxu0 0.0
        %752 = vmatpush.msra.mxu0 0.0
        %753 = vmatpush.msra.mxu0 0.0
        %754 = vmatpush.msra.mxu0 0.0
        %755 = vmatpush.msra.mxu0 0.0
        %756 = vmatpush.msra.mxu0 0.0
        %757 = vmatpush.msra.mxu0 0.0
        %758 = vmatpush.msra.mxu0 0.0
        %759 = vmatpush.msra.mxu0 0.0
        %760 = vmatpush.msra.mxu0 %v719
        %761 = vmatmul.f32.gmra.mxu0 %v723
        %v762 = vpop.f32.mrf.mxu0
        %v763 = vadd.f32 0.0, %v762
        %764 = vdwg.mxu0
        %v765 = vadd.f32 %v702, %v743
        %v766 = vadd.f32 %v703, %v763
        %s767 = scalar_lea.vmem %s4, 32
        %v768 = vld [vmem:[%s767] sm:$0xff]
        %v770 = vsel %vm475, %v768, 0
        %772 = vmatpush.msra.mxu0 0.0
        %773 = vmatpush.msra.mxu0 0.0
        %774 = vmatpush.msra.mxu0 0.0
        %775 = vmatpush.msra.mxu0 0.0
        %776 = vmatpush.msra.mxu0 0.0
        %777 = vmatpush.msra.mxu0 0.0
        %778 = vmatpush.msra.mxu0 0.0
        %779 = vmatpush.msra.mxu0 0.0
        %780 = vmatpush.msra.mxu0 0.0
        %781 = vmatpush.msra.mxu0 0.0
        %782 = vmatpush.msra.mxu0 0.0
        %783 = vmatpush.msra.mxu0 0.0
        %784 = vmatpush.msra.mxu0 0.0
        %785 = vmatpush.msra.mxu0 0.0
        %786 = vmatpush.msra.mxu0 0.0
        %787 = vmatpush.msra.mxu0 %v497
        %788 = vmatmul.f32.gmra.mxu0 %v770
        %v789 = vpop.f32.mrf.mxu0
        %v790 = vadd.f32 0.0, %v789
        %791 = vdwg.mxu0
        %792 = vmatpush.msra.mxu0 0.0
        %793 = vmatpush.msra.mxu0 0.0
        %794 = vmatpush.msra.mxu0 0.0
        %795 = vmatpush.msra.mxu0 0.0
        %796 = vmatpush.msra.mxu0 0.0
        %797 = vmatpush.msra.mxu0 0.0
        %798 = vmatpush.msra.mxu0 0.0
        %799 = vmatpush.msra.mxu0 0.0
        %800 = vmatpush.msra.mxu0 0.0
        %801 = vmatpush.msra.mxu0 0.0
        %802 = vmatpush.msra.mxu0 0.0
        %803 = vmatpush.msra.mxu0 0.0
        %804 = vmatpush.msra.mxu0 0.0
        %805 = vmatpush.msra.mxu0 0.0
        %806 = vmatpush.msra.mxu0 0.0
        %807 = vmatpush.msra.mxu0 %v517
        %808 = vmatmul.f32.gmra.mxu0 %v770
        %v809 = vpop.f32.mrf.mxu0
        %v810 = vadd.f32 0.0, %v809
        %811 = vdwg.mxu0
        %v812 = vadd.f32 %v765, %v790
        %v813 = vadd.f32 %v766, %v810
        %814 = vrot.lane.b32.xlu0 %v497, 127
        %v815 = vpop.permute.xlu0 %814
        %816 = vrot.lane.b32.xlu0 %v517, 127
        %v817 = vpop.permute.xlu0 %816
        %vm818 = vcmp.lt.s32.totalorder %v524, 127
        %v819 = vsel %vm818, %v815, %v817
        %v820 = vsel %vm818, %v817, %v815
        %s821 = scalar_lea.vmem %s1, 10
        %v822 = vld [vmem:[%s821] sm:$0x3]
        %v824 = vperm.slane %v822, 0
        %v825 = vperm.slane %v822, 1
        %v828 = vmul.f32 %v819, %v824
        %v829 = vmul.f32 %v820, %v825
        %s830 = scalar_lea.vmem %s4, 40
        %v831 = vld [vmem:[%s830] sm:$0xff]
        %v833 = vsel %vm475, %v831, 0
        %835 = vmatpush.msra.mxu0 0.0
        %836 = vmatpush.msra.mxu0 0.0
        %837 = vmatpush.msra.mxu0 0.0
        %838 = vmatpush.msra.mxu0 0.0
        %839 = vmatpush.msra.mxu0 0.0
        %840 = vmatpush.msra.mxu0 0.0
        %841 = vmatpush.msra.mxu0 0.0
        %842 = vmatpush.msra.mxu0 0.0
        %843 = vmatpush.msra.mxu0 0.0
        %844 = vmatpush.msra.mxu0 0.0
        %845 = vmatpush.msra.mxu0 0.0
        %846 = vmatpush.msra.mxu0 0.0
        %847 = vmatpush.msra.mxu0 0.0
        %848 = vmatpush.msra.mxu0 0.0
        %849 = vmatpush.msra.mxu0 0.0
        %850 = vmatpush.msra.mxu0 %v828
        %851 = vmatmul.f32.gmra.mxu0 %v833
        %v852 = vpop.f32.mrf.mxu0
        %v853 = vadd.f32 0.0, %v852
        %854 = vdwg.mxu0
        %855 = vmatpush.msra.mxu0 0.0
        %856 = vmatpush.msra.mxu0 0.0
        %857 = vmatpush.msra.mxu0 0.0
        %858 = vmatpush.msra.mxu0 0.0
        %859 = vmatpush.msra.mxu0 0.0
        %860 = vmatpush.msra.mxu0 0.0
        %861 = vmatpush.msra.mxu0 0.0
        %862 = vmatpush.msra.mxu0 0.0
        %863 = vmatpush.msra.mxu0 0.0
        %864 = vmatpush.msra.mxu0 0.0
        %865 = vmatpush.msra.mxu0 0.0
        %866 = vmatpush.msra.mxu0 0.0
        %867 = vmatpush.msra.mxu0 0.0
        %868 = vmatpush.msra.mxu0 0.0
        %869 = vmatpush.msra.mxu0 0.0
        %870 = vmatpush.msra.mxu0 %v829
        %871 = vmatmul.f32.gmra.mxu0 %v833
        %v872 = vpop.f32.mrf.mxu0
        %v873 = vadd.f32 0.0, %v872
        %874 = vdwg.mxu0
        %v875 = vadd.f32 %v812, %v853
        %v876 = vadd.f32 %v813, %v873
        %877 = vrot.lane.b32.xlu0 %v497, 113
        %v878 = vpop.permute.xlu0 %877
        %879 = vrot.lane.b32.xlu0 %v517, 113
        %v880 = vpop.permute.xlu0 %879
        %vm881 = vcmp.lt.s32.totalorder %v524, 113
        %v882 = vsel %vm881, %v878, %v880
        %v883 = vsel %vm881, %v880, %v878
        %s884 = scalar_lea.vmem %s1, 12
        %v885 = vld [vmem:[%s884] sm:$0x3]
        %v887 = vperm.slane %v885, 0
        %v888 = vperm.slane %v885, 1
        %v891 = vmul.f32 %v882, %v887
        %v892 = vmul.f32 %v883, %v888
        %s893 = scalar_lea.vmem %s4, 48
        %v894 = vld [vmem:[%s893] sm:$0xff]
        %v896 = vsel %vm475, %v894, 0
        %898 = vmatpush.msra.mxu0 0.0
        %899 = vmatpush.msra.mxu0 0.0
        %900 = vmatpush.msra.mxu0 0.0
        %901 = vmatpush.msra.mxu0 0.0
        %902 = vmatpush.msra.mxu0 0.0
        %903 = vmatpush.msra.mxu0 0.0
        %904 = vmatpush.msra.mxu0 0.0
        %905 = vmatpush.msra.mxu0 0.0
        %906 = vmatpush.msra.mxu0 0.0
        %907 = vmatpush.msra.mxu0 0.0
        %908 = vmatpush.msra.mxu0 0.0
        %909 = vmatpush.msra.mxu0 0.0
        %910 = vmatpush.msra.mxu0 0.0
        %911 = vmatpush.msra.mxu0 0.0
        %912 = vmatpush.msra.mxu0 0.0
        %913 = vmatpush.msra.mxu0 %v891
        %914 = vmatmul.f32.gmra.mxu0 %v896
        %v915 = vpop.f32.mrf.mxu0
        %v916 = vadd.f32 0.0, %v915
        %917 = vdwg.mxu0
        %918 = vmatpush.msra.mxu0 0.0
        %919 = vmatpush.msra.mxu0 0.0
        %920 = vmatpush.msra.mxu0 0.0
        %921 = vmatpush.msra.mxu0 0.0
        %922 = vmatpush.msra.mxu0 0.0
        %923 = vmatpush.msra.mxu0 0.0
        %924 = vmatpush.msra.mxu0 0.0
        %925 = vmatpush.msra.mxu0 0.0
        %926 = vmatpush.msra.mxu0 0.0
        %927 = vmatpush.msra.mxu0 0.0
        %928 = vmatpush.msra.mxu0 0.0
        %929 = vmatpush.msra.mxu0 0.0
        %930 = vmatpush.msra.mxu0 0.0
        %931 = vmatpush.msra.mxu0 0.0
        %932 = vmatpush.msra.mxu0 0.0
        %933 = vmatpush.msra.mxu0 %v892
        %934 = vmatmul.f32.gmra.mxu0 %v896
        %v935 = vpop.f32.mrf.mxu0
        %v936 = vadd.f32 0.0, %v935
        %937 = vdwg.mxu0
        %v938 = vadd.f32 %v875, %v916
        %v939 = vadd.f32 %v876, %v936
        %940 = vrot.lane.b32.xlu0 %v497, 112
        %v941 = vpop.permute.xlu0 %940
        %942 = vrot.lane.b32.xlu0 %v517, 112
        %v943 = vpop.permute.xlu0 %942
        %vm944 = vcmp.lt.s32.totalorder %v524, 112
        %v945 = vsel %vm944, %v941, %v943
        %v946 = vsel %vm944, %v943, %v941
        %s947 = scalar_lea.vmem %s1, 14
        %v948 = vld [vmem:[%s947] sm:$0x3]
        %v950 = vperm.slane %v948, 0
        %v951 = vperm.slane %v948, 1
        %v954 = vmul.f32 %v945, %v950
        %v955 = vmul.f32 %v946, %v951
        %s956 = scalar_lea.vmem %s4, 56
        %v957 = vld [vmem:[%s956] sm:$0xff]
        %v959 = vsel %vm475, %v957, 0
        %961 = vmatpush.msra.mxu0 0.0
        %962 = vmatpush.msra.mxu0 0.0
        %963 = vmatpush.msra.mxu0 0.0
        %964 = vmatpush.msra.mxu0 0.0
        %965 = vmatpush.msra.mxu0 0.0
        %966 = vmatpush.msra.mxu0 0.0
        %967 = vmatpush.msra.mxu0 0.0
        %968 = vmatpush.msra.mxu0 0.0
        %969 = vmatpush.msra.mxu0 0.0
        %970 = vmatpush.msra.mxu0 0.0
        %971 = vmatpush.msra.mxu0 0.0
        %972 = vmatpush.msra.mxu0 0.0
        %973 = vmatpush.msra.mxu0 0.0
        %974 = vmatpush.msra.mxu0 0.0
        %975 = vmatpush.msra.mxu0 0.0
        %976 = vmatpush.msra.mxu0 %v954
        %977 = vmatmul.f32.gmra.mxu0 %v959
        %v978 = vpop.f32.mrf.mxu0
        %v979 = vadd.f32 0.0, %v978
        %980 = vdwg.mxu0
        %981 = vmatpush.msra.mxu0 0.0
        %982 = vmatpush.msra.mxu0 0.0
        %983 = vmatpush.msra.mxu0 0.0
        %984 = vmatpush.msra.mxu0 0.0
        %985 = vmatpush.msra.mxu0 0.0
        %986 = vmatpush.msra.mxu0 0.0
        %987 = vmatpush.msra.mxu0 0.0
        %988 = vmatpush.msra.mxu0 0.0
        %989 = vmatpush.msra.mxu0 0.0
        %990 = vmatpush.msra.mxu0 0.0
        %991 = vmatpush.msra.mxu0 0.0
        %992 = vmatpush.msra.mxu0 0.0
        %993 = vmatpush.msra.mxu0 0.0
        %994 = vmatpush.msra.mxu0 0.0
        %995 = vmatpush.msra.mxu0 0.0
        %996 = vmatpush.msra.mxu0 %v955
        %997 = vmatmul.f32.gmra.mxu0 %v959
        %v998 = vpop.f32.mrf.mxu0
        %v999 = vadd.f32 0.0, %v998
        %1000 = vdwg.mxu0
        %v1001 = vadd.f32 %v938, %v979
        %v1002 = vadd.f32 %v939, %v999
        %1003 = vrot.lane.b32.xlu0 %v497, 111
        %v1004 = vpop.permute.xlu0 %1003
        %1005 = vrot.lane.b32.xlu0 %v517, 111
        %v1006 = vpop.permute.xlu0 %1005
        %vm1007 = vcmp.lt.s32.totalorder %v524, 111
        %v1008 = vsel %vm1007, %v1004, %v1006
        %v1009 = vsel %vm1007, %v1006, %v1004
        %s1010 = scalar_lea.vmem %s1, 16
        %v1011 = vld [vmem:[%s1010] sm:$0x3]
        %v1013 = vperm.slane %v1011, 0
        %v1014 = vperm.slane %v1011, 1
        %v1017 = vmul.f32 %v1008, %v1013
        %v1018 = vmul.f32 %v1009, %v1014
        %s1019 = scalar_lea.vmem %s4, 64
        %v1020 = vld [vmem:[%s1019] sm:$0xff]
        %v1022 = vsel %vm475, %v1020, 0
        %1024 = vmatpush.msra.mxu0 0.0
        %1025 = vmatpush.msra.mxu0 0.0
        %1026 = vmatpush.msra.mxu0 0.0
        %1027 = vmatpush.msra.mxu0 0.0
        %1028 = vmatpush.msra.mxu0 0.0
        %1029 = vmatpush.msra.mxu0 0.0
        %1030 = vmatpush.msra.mxu0 0.0
        %1031 = vmatpush.msra.mxu0 0.0
        %1032 = vmatpush.msra.mxu0 0.0
        %1033 = vmatpush.msra.mxu0 0.0
        %1034 = vmatpush.msra.mxu0 0.0
        %1035 = vmatpush.msra.mxu0 0.0
        %1036 = vmatpush.msra.mxu0 0.0
        %1037 = vmatpush.msra.mxu0 0.0
        %1038 = vmatpush.msra.mxu0 0.0
        %1039 = vmatpush.msra.mxu0 %v1017
        %1040 = vmatmul.f32.gmra.mxu0 %v1022
        %v1041 = vpop.f32.mrf.mxu0
        %v1042 = vadd.f32 0.0, %v1041
        %1043 = vdwg.mxu0
        %1044 = vmatpush.msra.mxu0 0.0
        %1045 = vmatpush.msra.mxu0 0.0
        %1046 = vmatpush.msra.mxu0 0.0
        %1047 = vmatpush.msra.mxu0 0.0
        %1048 = vmatpush.msra.mxu0 0.0
        %1049 = vmatpush.msra.mxu0 0.0
        %1050 = vmatpush.msra.mxu0 0.0
        %1051 = vmatpush.msra.mxu0 0.0
        %1052 = vmatpush.msra.mxu0 0.0
        %1053 = vmatpush.msra.mxu0 0.0
        %1054 = vmatpush.msra.mxu0 0.0
        %1055 = vmatpush.msra.mxu0 0.0
        %1056 = vmatpush.msra.mxu0 0.0
        %1057 = vmatpush.msra.mxu0 0.0
        %1058 = vmatpush.msra.mxu0 0.0
        %1059 = vmatpush.msra.mxu0 %v1018
        %1060 = vmatmul.f32.gmra.mxu0 %v1022
        %v1061 = vpop.f32.mrf.mxu0
        %v1062 = vadd.f32 0.0, %v1061
        %1063 = vdwg.mxu0
        %v1064 = vadd.f32 %v1001, %v1042
        %v1065 = vadd.f32 %v1002, %v1062
        %v1066 = vld [vmem:[%s5] sm:$0xff]
        %1068 = vset.pattern.permute.xlu0 0
        %1069 = vperm.xlu0 %1068, %v1066
        %v1070 = vpop.permute.xlu0 %1069
        %v1072 = vadd.f32 %v1064, %v1070
        %v1073 = vadd.f32 %v1065, %v1070
        %v1074 = vmax.f32 %v1072, 0.0
        %v1075 = vmax.f32 %v1073, 0.0
        %s1076 = scalar_lea.vmem %s4, 72
        %v1077 = vld [vmem:[%s1076] sm:$0xff]
        %s1078 = scalar_lea.vmem %s4, 80
        %v1079 = vld [vmem:[%s1078] sm:$0xff]
        %v1081 = vsel %vm475, %v1079, 0
        %1083 = vmatpush.msra.mxu0 0.0
        %1084 = vmatpush.msra.mxu0 0.0
        %1085 = vmatpush.msra.mxu0 0.0
        %1086 = vmatpush.msra.mxu0 0.0
        %1087 = vmatpush.msra.mxu0 0.0
        %1088 = vmatpush.msra.mxu0 0.0
        %1089 = vmatpush.msra.mxu0 0.0
        %1090 = vmatpush.msra.mxu0 0.0
        %1091 = vmatpush.msra.mxu0 0.0
        %1092 = vmatpush.msra.mxu0 0.0
        %1093 = vmatpush.msra.mxu0 0.0
        %1094 = vmatpush.msra.mxu0 0.0
        %1095 = vmatpush.msra.mxu0 0.0
        %1096 = vmatpush.msra.mxu0 0.0
        %1097 = vmatpush.msra.mxu0 0.0
        %1098 = vmatpush.msra.mxu0 %v551
        %1099 = vmatmul.f32.gmra.mxu0 %v1081
        %v1100 = vpop.f32.mrf.mxu0
        %v1101 = vadd.f32 0.0, %v1100
        %1102 = vdwg.mxu0
        %1103 = vmatpush.msra.mxu0 0.0
        %1104 = vmatpush.msra.mxu0 0.0
        %1105 = vmatpush.msra.mxu0 0.0
        %1106 = vmatpush.msra.mxu0 0.0
        %1107 = vmatpush.msra.mxu0 0.0
        %1108 = vmatpush.msra.mxu0 0.0
        %1109 = vmatpush.msra.mxu0 0.0
        %1110 = vmatpush.msra.mxu0 0.0
        %1111 = vmatpush.msra.mxu0 0.0
        %1112 = vmatpush.msra.mxu0 0.0
        %1113 = vmatpush.msra.mxu0 0.0
        %1114 = vmatpush.msra.mxu0 0.0
        %1115 = vmatpush.msra.mxu0 0.0
        %1116 = vmatpush.msra.mxu0 0.0
        %1117 = vmatpush.msra.mxu0 0.0
        %1118 = vmatpush.msra.mxu0 %v552
        %1119 = vmatmul.f32.gmra.mxu0 %v1081
        %v1120 = vpop.f32.mrf.mxu0
        %v1121 = vadd.f32 0.0, %v1120
        %1122 = vdwg.mxu0
        %v1124 = vsel %vm475, %v1077, 0
        %1126 = vmatpush.msra.mxu0 0.0
        %1127 = vmatpush.msra.mxu0 0.0
        %1128 = vmatpush.msra.mxu0 0.0
        %1129 = vmatpush.msra.mxu0 0.0
        %1130 = vmatpush.msra.mxu0 0.0
        %1131 = vmatpush.msra.mxu0 0.0
        %1132 = vmatpush.msra.mxu0 0.0
        %1133 = vmatpush.msra.mxu0 0.0
        %1134 = vmatpush.msra.mxu0 0.0
        %1135 = vmatpush.msra.mxu0 0.0
        %1136 = vmatpush.msra.mxu0 0.0
        %1137 = vmatpush.msra.mxu0 0.0
        %1138 = vmatpush.msra.mxu0 0.0
        %1139 = vmatpush.msra.mxu0 0.0
        %1140 = vmatpush.msra.mxu0 0.0
        %1141 = vmatpush.msra.mxu0 %v534
        %1142 = vmatmul.f32.gmra.mxu0 %v1124
        %v1143 = vpop.f32.mrf.mxu0
        %v1144 = vadd.f32 %v1101, %v1143
        %1145 = vdwg.mxu0
        %1146 = vmatpush.msra.mxu0 0.0
        %1147 = vmatpush.msra.mxu0 0.0
        %1148 = vmatpush.msra.mxu0 0.0
        %1149 = vmatpush.msra.mxu0 0.0
        %1150 = vmatpush.msra.mxu0 0.0
        %1151 = vmatpush.msra.mxu0 0.0
        %1152 = vmatpush.msra.mxu0 0.0
        %1153 = vmatpush.msra.mxu0 0.0
        %1154 = vmatpush.msra.mxu0 0.0
        %1155 = vmatpush.msra.mxu0 0.0
        %1156 = vmatpush.msra.mxu0 0.0
        %1157 = vmatpush.msra.mxu0 0.0
        %1158 = vmatpush.msra.mxu0 0.0
        %1159 = vmatpush.msra.mxu0 0.0
        %1160 = vmatpush.msra.mxu0 0.0
        %1161 = vmatpush.msra.mxu0 %v535
        %1162 = vmatmul.f32.gmra.mxu0 %v1124
        %v1163 = vpop.f32.mrf.mxu0
        %v1164 = vadd.f32 %v1121, %v1163
        %1165 = vdwg.mxu0
        %s1166 = scalar_lea.vmem %s4, 88
        %v1167 = vld [vmem:[%s1166] sm:$0xff]
        %v1169 = vsel %vm475, %v1167, 0
        %1171 = vmatpush.msra.mxu0 0.0
        %1172 = vmatpush.msra.mxu0 0.0
        %1173 = vmatpush.msra.mxu0 0.0
        %1174 = vmatpush.msra.mxu0 0.0
        %1175 = vmatpush.msra.mxu0 0.0
        %1176 = vmatpush.msra.mxu0 0.0
        %1177 = vmatpush.msra.mxu0 0.0
        %1178 = vmatpush.msra.mxu0 0.0
        %1179 = vmatpush.msra.mxu0 0.0
        %1180 = vmatpush.msra.mxu0 0.0
        %1181 = vmatpush.msra.mxu0 0.0
        %1182 = vmatpush.msra.mxu0 0.0
        %1183 = vmatpush.msra.mxu0 0.0
        %1184 = vmatpush.msra.mxu0 0.0
        %1185 = vmatpush.msra.mxu0 0.0
        %1186 = vmatpush.msra.mxu0 %v655
        %1187 = vmatmul.f32.gmra.mxu0 %v1169
        %v1188 = vpop.f32.mrf.mxu0
        %v1189 = vadd.f32 0.0, %v1188
        %1190 = vdwg.mxu0
        %1191 = vmatpush.msra.mxu0 0.0
        %1192 = vmatpush.msra.mxu0 0.0
        %1193 = vmatpush.msra.mxu0 0.0
        %1194 = vmatpush.msra.mxu0 0.0
        %1195 = vmatpush.msra.mxu0 0.0
        %1196 = vmatpush.msra.mxu0 0.0
        %1197 = vmatpush.msra.mxu0 0.0
        %1198 = vmatpush.msra.mxu0 0.0
        %1199 = vmatpush.msra.mxu0 0.0
        %1200 = vmatpush.msra.mxu0 0.0
        %1201 = vmatpush.msra.mxu0 0.0
        %1202 = vmatpush.msra.mxu0 0.0
        %1203 = vmatpush.msra.mxu0 0.0
        %1204 = vmatpush.msra.mxu0 0.0
        %1205 = vmatpush.msra.mxu0 0.0
        %1206 = vmatpush.msra.mxu0 %v656
        %1207 = vmatmul.f32.gmra.mxu0 %v1169
        %v1208 = vpop.f32.mrf.mxu0
        %v1209 = vadd.f32 0.0, %v1208
        %1210 = vdwg.mxu0
        %v1211 = vadd.f32 %v1144, %v1189
        %v1212 = vadd.f32 %v1164, %v1209
        %s1213 = scalar_lea.vmem %s4, 96
        %v1214 = vld [vmem:[%s1213] sm:$0xff]
        %v1216 = vsel %vm475, %v1214, 0
        %1218 = vmatpush.msra.mxu0 0.0
        %1219 = vmatpush.msra.mxu0 0.0
        %1220 = vmatpush.msra.mxu0 0.0
        %1221 = vmatpush.msra.mxu0 0.0
        %1222 = vmatpush.msra.mxu0 0.0
        %1223 = vmatpush.msra.mxu0 0.0
        %1224 = vmatpush.msra.mxu0 0.0
        %1225 = vmatpush.msra.mxu0 0.0
        %1226 = vmatpush.msra.mxu0 0.0
        %1227 = vmatpush.msra.mxu0 0.0
        %1228 = vmatpush.msra.mxu0 0.0
        %1229 = vmatpush.msra.mxu0 0.0
        %1230 = vmatpush.msra.mxu0 0.0
        %1231 = vmatpush.msra.mxu0 0.0
        %1232 = vmatpush.msra.mxu0 0.0
        %1233 = vmatpush.msra.mxu0 %v718
        %1234 = vmatmul.f32.gmra.mxu0 %v1216
        %v1235 = vpop.f32.mrf.mxu0
        %v1236 = vadd.f32 0.0, %v1235
        %1237 = vdwg.mxu0
        %1238 = vmatpush.msra.mxu0 0.0
        %1239 = vmatpush.msra.mxu0 0.0
        %1240 = vmatpush.msra.mxu0 0.0
        %1241 = vmatpush.msra.mxu0 0.0
        %1242 = vmatpush.msra.mxu0 0.0
        %1243 = vmatpush.msra.mxu0 0.0
        %1244 = vmatpush.msra.mxu0 0.0
        %1245 = vmatpush.msra.mxu0 0.0
        %1246 = vmatpush.msra.mxu0 0.0
        %1247 = vmatpush.msra.mxu0 0.0
        %1248 = vmatpush.msra.mxu0 0.0
        %1249 = vmatpush.msra.mxu0 0.0
        %1250 = vmatpush.msra.mxu0 0.0
        %1251 = vmatpush.msra.mxu0 0.0
        %1252 = vmatpush.msra.mxu0 0.0
        %1253 = vmatpush.msra.mxu0 %v719
        %1254 = vmatmul.f32.gmra.mxu0 %v1216
        %v1255 = vpop.f32.mrf.mxu0
        %v1256 = vadd.f32 0.0, %v1255
        %1257 = vdwg.mxu0
        %v1258 = vadd.f32 %v1211, %v1236
        %v1259 = vadd.f32 %v1212, %v1256
        %s1260 = scalar_lea.vmem %s4, 104
        %v1261 = vld [vmem:[%s1260] sm:$0xff]
        %v1263 = vsel %vm475, %v1261, 0
        %1265 = vmatpush.msra.mxu0 0.0
        %1266 = vmatpush.msra.mxu0 0.0
        %1267 = vmatpush.msra.mxu0 0.0
        %1268 = vmatpush.msra.mxu0 0.0
        %1269 = vmatpush.msra.mxu0 0.0
        %1270 = vmatpush.msra.mxu0 0.0
        %1271 = vmatpush.msra.mxu0 0.0
        %1272 = vmatpush.msra.mxu0 0.0
        %1273 = vmatpush.msra.mxu0 0.0
        %1274 = vmatpush.msra.mxu0 0.0
        %1275 = vmatpush.msra.mxu0 0.0
        %1276 = vmatpush.msra.mxu0 0.0
        %1277 = vmatpush.msra.mxu0 0.0
        %1278 = vmatpush.msra.mxu0 0.0
        %1279 = vmatpush.msra.mxu0 0.0
        %1280 = vmatpush.msra.mxu0 %v497
        %1281 = vmatmul.f32.gmra.mxu0 %v1263
        %v1282 = vpop.f32.mrf.mxu0
        %v1283 = vadd.f32 0.0, %v1282
        %1284 = vdwg.mxu0
        %1285 = vmatpush.msra.mxu0 0.0
        %1286 = vmatpush.msra.mxu0 0.0
        %1287 = vmatpush.msra.mxu0 0.0
        %1288 = vmatpush.msra.mxu0 0.0
        %1289 = vmatpush.msra.mxu0 0.0
        %1290 = vmatpush.msra.mxu0 0.0
        %1291 = vmatpush.msra.mxu0 0.0
        %1292 = vmatpush.msra.mxu0 0.0
        %1293 = vmatpush.msra.mxu0 0.0
        %1294 = vmatpush.msra.mxu0 0.0
        %1295 = vmatpush.msra.mxu0 0.0
        %1296 = vmatpush.msra.mxu0 0.0
        %1297 = vmatpush.msra.mxu0 0.0
        %1298 = vmatpush.msra.mxu0 0.0
        %1299 = vmatpush.msra.mxu0 0.0
        %1300 = vmatpush.msra.mxu0 %v517
        %1301 = vmatmul.f32.gmra.mxu0 %v1263
        %v1302 = vpop.f32.mrf.mxu0
        %v1303 = vadd.f32 0.0, %v1302
        %1304 = vdwg.mxu0
        %v1305 = vadd.f32 %v1258, %v1283
        %v1306 = vadd.f32 %v1259, %v1303
        %s1307 = scalar_lea.vmem %s4, 112
        %v1308 = vld [vmem:[%s1307] sm:$0xff]
        %v1310 = vsel %vm475, %v1308, 0
        %1312 = vmatpush.msra.mxu0 0.0
        %1313 = vmatpush.msra.mxu0 0.0
        %1314 = vmatpush.msra.mxu0 0.0
        %1315 = vmatpush.msra.mxu0 0.0
        %1316 = vmatpush.msra.mxu0 0.0
        %1317 = vmatpush.msra.mxu0 0.0
        %1318 = vmatpush.msra.mxu0 0.0
        %1319 = vmatpush.msra.mxu0 0.0
        %1320 = vmatpush.msra.mxu0 0.0
        %1321 = vmatpush.msra.mxu0 0.0
        %1322 = vmatpush.msra.mxu0 0.0
        %1323 = vmatpush.msra.mxu0 0.0
        %1324 = vmatpush.msra.mxu0 0.0
        %1325 = vmatpush.msra.mxu0 0.0
        %1326 = vmatpush.msra.mxu0 0.0
        %1327 = vmatpush.msra.mxu0 %v828
        %1328 = vmatmul.f32.gmra.mxu0 %v1310
        %v1329 = vpop.f32.mrf.mxu0
        %v1330 = vadd.f32 0.0, %v1329
        %1331 = vdwg.mxu0
        %1332 = vmatpush.msra.mxu0 0.0
        %1333 = vmatpush.msra.mxu0 0.0
        %1334 = vmatpush.msra.mxu0 0.0
        %1335 = vmatpush.msra.mxu0 0.0
        %1336 = vmatpush.msra.mxu0 0.0
        %1337 = vmatpush.msra.mxu0 0.0
        %1338 = vmatpush.msra.mxu0 0.0
        %1339 = vmatpush.msra.mxu0 0.0
        %1340 = vmatpush.msra.mxu0 0.0
        %1341 = vmatpush.msra.mxu0 0.0
        %1342 = vmatpush.msra.mxu0 0.0
        %1343 = vmatpush.msra.mxu0 0.0
        %1344 = vmatpush.msra.mxu0 0.0
        %1345 = vmatpush.msra.mxu0 0.0
        %1346 = vmatpush.msra.mxu0 0.0
        %1347 = vmatpush.msra.mxu0 %v829
        %1348 = vmatmul.f32.gmra.mxu0 %v1310
        %v1349 = vpop.f32.mrf.mxu0
        %v1350 = vadd.f32 0.0, %v1349
        %1351 = vdwg.mxu0
        %v1352 = vadd.f32 %v1305, %v1330
        %v1353 = vadd.f32 %v1306, %v1350
        %s1354 = scalar_lea.vmem %s4, 120
        %v1355 = vld [vmem:[%s1354] sm:$0xff]
        %v1357 = vsel %vm475, %v1355, 0
        %1359 = vmatpush.msra.mxu0 0.0
        %1360 = vmatpush.msra.mxu0 0.0
        %1361 = vmatpush.msra.mxu0 0.0
        %1362 = vmatpush.msra.mxu0 0.0
        %1363 = vmatpush.msra.mxu0 0.0
        %1364 = vmatpush.msra.mxu0 0.0
        %1365 = vmatpush.msra.mxu0 0.0
        %1366 = vmatpush.msra.mxu0 0.0
        %1367 = vmatpush.msra.mxu0 0.0
        %1368 = vmatpush.msra.mxu0 0.0
        %1369 = vmatpush.msra.mxu0 0.0
        %1370 = vmatpush.msra.mxu0 0.0
        %1371 = vmatpush.msra.mxu0 0.0
        %1372 = vmatpush.msra.mxu0 0.0
        %1373 = vmatpush.msra.mxu0 0.0
        %1374 = vmatpush.msra.mxu0 %v891
        %1375 = vmatmul.f32.gmra.mxu0 %v1357
        %v1376 = vpop.f32.mrf.mxu0
        %v1377 = vadd.f32 0.0, %v1376
        %1378 = vdwg.mxu0
        %1379 = vmatpush.msra.mxu0 0.0
        %1380 = vmatpush.msra.mxu0 0.0
        %1381 = vmatpush.msra.mxu0 0.0
        %1382 = vmatpush.msra.mxu0 0.0
        %1383 = vmatpush.msra.mxu0 0.0
        %1384 = vmatpush.msra.mxu0 0.0
        %1385 = vmatpush.msra.mxu0 0.0
        %1386 = vmatpush.msra.mxu0 0.0
        %1387 = vmatpush.msra.mxu0 0.0
        %1388 = vmatpush.msra.mxu0 0.0
        %1389 = vmatpush.msra.mxu0 0.0
        %1390 = vmatpush.msra.mxu0 0.0
        %1391 = vmatpush.msra.mxu0 0.0
        %1392 = vmatpush.msra.mxu0 0.0
        %1393 = vmatpush.msra.mxu0 0.0
        %1394 = vmatpush.msra.mxu0 %v892
        %1395 = vmatmul.f32.gmra.mxu0 %v1357
        %v1396 = vpop.f32.mrf.mxu0
        %v1397 = vadd.f32 0.0, %v1396
        %1398 = vdwg.mxu0
        %v1399 = vadd.f32 %v1352, %v1377
        %v1400 = vadd.f32 %v1353, %v1397
        %s1401 = scalar_lea.vmem %s4, 128
        %v1402 = vld [vmem:[%s1401] sm:$0xff]
        %v1404 = vsel %vm475, %v1402, 0
        %1406 = vmatpush.msra.mxu0 0.0
        %1407 = vmatpush.msra.mxu0 0.0
        %1408 = vmatpush.msra.mxu0 0.0
        %1409 = vmatpush.msra.mxu0 0.0
        %1410 = vmatpush.msra.mxu0 0.0
        %1411 = vmatpush.msra.mxu0 0.0
        %1412 = vmatpush.msra.mxu0 0.0
        %1413 = vmatpush.msra.mxu0 0.0
        %1414 = vmatpush.msra.mxu0 0.0
        %1415 = vmatpush.msra.mxu0 0.0
        %1416 = vmatpush.msra.mxu0 0.0
        %1417 = vmatpush.msra.mxu0 0.0
        %1418 = vmatpush.msra.mxu0 0.0
        %1419 = vmatpush.msra.mxu0 0.0
        %1420 = vmatpush.msra.mxu0 0.0
        %1421 = vmatpush.msra.mxu0 %v954
        %1422 = vmatmul.f32.gmra.mxu0 %v1404
        %v1423 = vpop.f32.mrf.mxu0
        %v1424 = vadd.f32 0.0, %v1423
        %1425 = vdwg.mxu0
        %1426 = vmatpush.msra.mxu0 0.0
        %1427 = vmatpush.msra.mxu0 0.0
        %1428 = vmatpush.msra.mxu0 0.0
        %1429 = vmatpush.msra.mxu0 0.0
        %1430 = vmatpush.msra.mxu0 0.0
        %1431 = vmatpush.msra.mxu0 0.0
        %1432 = vmatpush.msra.mxu0 0.0
        %1433 = vmatpush.msra.mxu0 0.0
        %1434 = vmatpush.msra.mxu0 0.0
        %1435 = vmatpush.msra.mxu0 0.0
        %1436 = vmatpush.msra.mxu0 0.0
        %1437 = vmatpush.msra.mxu0 0.0
        %1438 = vmatpush.msra.mxu0 0.0
        %1439 = vmatpush.msra.mxu0 0.0
        %1440 = vmatpush.msra.mxu0 0.0
        %1441 = vmatpush.msra.mxu0 %v955
        %1442 = vmatmul.f32.gmra.mxu0 %v1404
        %v1443 = vpop.f32.mrf.mxu0
        %v1444 = vadd.f32 0.0, %v1443
        %1445 = vdwg.mxu0
        %v1446 = vadd.f32 %v1399, %v1424
        %v1447 = vadd.f32 %v1400, %v1444
        %s1448 = scalar_lea.vmem %s4, 136
        %v1449 = vld [vmem:[%s1448] sm:$0xff]
        %v1451 = vsel %vm475, %v1449, 0
        %1453 = vmatpush.msra.mxu0 0.0
        %1454 = vmatpush.msra.mxu0 0.0
        %1455 = vmatpush.msra.mxu0 0.0
        %1456 = vmatpush.msra.mxu0 0.0
        %1457 = vmatpush.msra.mxu0 0.0
        %1458 = vmatpush.msra.mxu0 0.0
        %1459 = vmatpush.msra.mxu0 0.0
        %1460 = vmatpush.msra.mxu0 0.0
        %1461 = vmatpush.msra.mxu0 0.0
        %1462 = vmatpush.msra.mxu0 0.0
        %1463 = vmatpush.msra.mxu0 0.0
        %1464 = vmatpush.msra.mxu0 0.0
        %1465 = vmatpush.msra.mxu0 0.0
        %1466 = vmatpush.msra.mxu0 0.0
        %1467 = vmatpush.msra.mxu0 0.0
        %1468 = vmatpush.msra.mxu0 %v1017
        %1469 = vmatmul.f32.gmra.mxu0 %v1451
        %v1470 = vpop.f32.mrf.mxu0
        %v1471 = vadd.f32 0.0, %v1470
        %1472 = vdwg.mxu0
        %1473 = vmatpush.msra.mxu0 0.0
        %1474 = vmatpush.msra.mxu0 0.0
        %1475 = vmatpush.msra.mxu0 0.0
        %1476 = vmatpush.msra.mxu0 0.0
        %1477 = vmatpush.msra.mxu0 0.0
        %1478 = vmatpush.msra.mxu0 0.0
        %1479 = vmatpush.msra.mxu0 0.0
        %1480 = vmatpush.msra.mxu0 0.0
        %1481 = vmatpush.msra.mxu0 0.0
        %1482 = vmatpush.msra.mxu0 0.0
        %1483 = vmatpush.msra.mxu0 0.0
        %1484 = vmatpush.msra.mxu0 0.0
        %1485 = vmatpush.msra.mxu0 0.0
        %1486 = vmatpush.msra.mxu0 0.0
        %1487 = vmatpush.msra.mxu0 0.0
        %1488 = vmatpush.msra.mxu0 %v1018
        %1489 = vmatmul.f32.gmra.mxu0 %v1451
        %v1490 = vpop.f32.mrf.mxu0
        %v1491 = vadd.f32 0.0, %v1490
        %1492 = vdwg.mxu0
        %v1493 = vadd.f32 %v1446, %v1471
        %v1494 = vadd.f32 %v1447, %v1491
        %s1495 = scalar_lea.vmem %s5, 8
        %v1496 = vld [vmem:[%s1495] sm:$0xff]
        %1498 = vset.pattern.permute.xlu0 0
        %1499 = vperm.xlu0 %1498, %v1496
        %v1500 = vpop.permute.xlu0 %1499
        %v1502 = vadd.f32 %v1493, %v1500
        %v1503 = vadd.f32 %v1494, %v1500
        %v1504 = vmax.f32 %v1502, 0.0
        %v1505 = vmax.f32 %v1503, 0.0
        %v1506 = vadd.f32 %v1074, %v1504
        %v1507 = vadd.f32 %v1075, %v1505
        %v1508 = vadd.f32 %v1506, %v1507
        %1509 = vadd.xlane.f32.xlu0 %v1508
        %v1510 = vpop.xlane.xlu0 %1509
        %v1511 = vrcp.pop 256.0
        %v1512 = vmul.f32 256.0, %v1511
        %v1513 = vsub.f32 1.0, %v1512
        %v1514 = vmul.f32 %v1511, %v1513
        %v1515 = vadd.f32 %v1511, %v1514
        %vm1516 = vweird.f32 %v1511
        %v1517 = vsel %vm1516, %v1511, %v1515
        %v1518 = vmul.f32 %v1510, %v1517
        %v1519 = vld [vmem:[%s6] sm:$0xf]
        %v1520 = vld [vmem:[%s7] sm:$0xf]
        %v1522 = vsel %vm475, %v1519, 0
        %1524 = vmatpush.msra.mxu0 0.0
        %1525 = vmatpush.msra.mxu0 0.0
        %1526 = vmatpush.msra.mxu0 0.0
        %1527 = vmatpush.msra.mxu0 0.0
        %1528 = vmatpush.msra.mxu0 0.0
        %1529 = vmatpush.msra.mxu0 0.0
        %1530 = vmatpush.msra.mxu0 0.0
        %1531 = vmatpush.msra.mxu0 0.0
        %1532 = vmatpush.msra.mxu0 0.0
        %1533 = vmatpush.msra.mxu0 0.0
        %1534 = vmatpush.msra.mxu0 0.0
        %1535 = vmatpush.msra.mxu0 0.0
        %1536 = vmatpush.msra.mxu0 0.0
        %1537 = vmatpush.msra.mxu0 0.0
        %1538 = vmatpush.msra.mxu0 0.0
        %1539 = vmatpush.msra.mxu0 %v1518
        %1540 = vmatmul.f32.gmra.mxu0 %v1522
        %v1541 = vpop.f32.mrf.mxu0
        %v1542 = vadd.f32 %v1520, %v1541
        %1543 = vdwg.mxu0
        %v1544 = vld [vmem:[%s8] sm:$0xff]
        %v1545 = vld [vmem:[%s9] sm:$0xff]
        %vm1546 = vcmask 31744
        %v1548 = vsel %vm1546, %v1544, 0
        %vm1550 = vcmask 1043456
        %v1552 = vsel %vm1550, %v1542, 0
        %1554 = vmatpush.msra.mxu0 0.0
        %1555 = vmatpush.msra.mxu0 0.0
        %1556 = vmatpush.msra.mxu0 0.0
        %1557 = vmatpush.msra.mxu0 0.0
        %1558 = vmatpush.msra.mxu0 0.0
        %1559 = vmatpush.msra.mxu0 0.0
        %1560 = vmatpush.msra.mxu0 0.0
        %1561 = vmatpush.msra.mxu0 0.0
        %1562 = vmatpush.msra.mxu0 0.0
        %1563 = vmatpush.msra.mxu0 0.0
        %1564 = vmatpush.msra.mxu0 0.0
        %1565 = vmatpush.msra.mxu0 0.0
        %1566 = vmatpush.msra.mxu0 0.0
        %1567 = vmatpush.msra.mxu0 0.0
        %1568 = vmatpush.msra.mxu0 0.0
        %1569 = vmatpush.msra.mxu0 %v1552
        %1570 = vmatmul.f32.gmra.mxu0 %v1548
        %v1571 = vpop.f32.mrf.mxu0
        %v1572 = vadd.f32 %v1545, %v1571
        %1573 = vdwg.mxu0
        %s1574 = scalar_lea.vmem %s8, 8
        %v1575 = vld [vmem:[%s1574] sm:$0xff]
        %s1576 = scalar_lea.vmem %s9, 8
        %v1577 = vld [vmem:[%s1576] sm:$0xff]
        %v1579 = vsel %vm1546, %v1575, 0
        %1581 = vmatpush.msra.mxu0 0.0
        %1582 = vmatpush.msra.mxu0 0.0
        %1583 = vmatpush.msra.mxu0 0.0
        %1584 = vmatpush.msra.mxu0 0.0
        %1585 = vmatpush.msra.mxu0 0.0
        %1586 = vmatpush.msra.mxu0 0.0
        %1587 = vmatpush.msra.mxu0 0.0
        %1588 = vmatpush.msra.mxu0 0.0
        %1589 = vmatpush.msra.mxu0 0.0
        %1590 = vmatpush.msra.mxu0 0.0
        %1591 = vmatpush.msra.mxu0 0.0
        %1592 = vmatpush.msra.mxu0 0.0
        %1593 = vmatpush.msra.mxu0 0.0
        %1594 = vmatpush.msra.mxu0 0.0
        %1595 = vmatpush.msra.mxu0 0.0
        %1596 = vmatpush.msra.mxu0 %v1552
        %1597 = vmatmul.f32.gmra.mxu0 %v1579
        %v1598 = vpop.f32.mrf.mxu0
        %v1599 = vadd.f32 %v1577, %v1598
        %1600 = vdwg.mxu0
        %v1601 = vmax.f32 %v1572, %v1599
        %v1602 = vsub.f32 %v1572, %v1601
        %v1603 = vmul.f32 %v1602, 1.442695
        %v1604 = vpow.pop %v1603
        %v1605 = vsub.f32 %v1599, %v1601
        %v1606 = vmul.f32 %v1605, 1.442695
        %v1607 = vpow.pop %v1606
        %v1608 = vadd.f32 %v1604, %v1607
        %v1609 = vrcp.pop %v1608
        %v1610 = vmul.f32 %v1608, %v1609
        %v1611 = vsub.f32 1.0, %v1610
        %v1612 = vmul.f32 %v1609, %v1611
        %v1613 = vadd.f32 %v1609, %v1612
        %vm1614 = vweird.f32 %v1608
        %vm1615 = vweird.f32 %v1609
        %vm1616 = vmor %vm1614, %vm1615
        %v1617 = vsel %vm1616, %v1609, %v1613
        %v1618 = vand.u32 2147483647, %v1608
        %vm1619 = vcmp.eq.f32.partialorder %v1618, 8.507059e+37
        %v1620 = vand.u32 %v1608, 2147483648
        %v1621 = vor.u32 1.1754944e-38, %v1620
        %v1622 = vsel %vm1619, %v1621, %v1617
        %v1623 = vmul.f32 %v1604, %v1622
        %1625 = vset.pattern.permute.xlu0 0
        %1626 = vperm.xlu0 %1625, %v1623
        %v1627 = vpop.permute.xlu0 %1626
        %v1629 = vmul.f32 %v1074, %v1627
        %v1630 = vmul.f32 %v1075, %v1627
        %v1631 = vmul.f32 %v1607, %v1622
        %1633 = vset.pattern.permute.xlu0 0
        %1634 = vperm.xlu0 %1633, %v1631
        %v1635 = vpop.permute.xlu0 %1634
        %v1637 = vmul.f32 %v1504, %v1635
        %v1638 = vmul.f32 %v1505, %v1635
        %v1639 = vadd.f32 %v1629, %v1637
        %v1640 = vadd.f32 %v1630, %v1638
        %v1641 = vld [vmem:[%s10] sm:$0xff]
        %v1642 = vld [vmem:[%s10 + $0x8] sm:$0xff]
        %v1643 = vld [vmem:[%s11] sm:$0xff]
        %v1644 = vld [vmem:[%s11 + $0x8] sm:$0xff]
        %1646 = vset.pattern.permute.xlu0 0
        %1647 = vperm.xlu0 %1646, %v1643
        %v1648 = vpop.permute.xlu0 %1647
        %1651 = vset.pattern.permute.xlu0 0
        %1652 = vperm.xlu0 %1651, %v1644
        %v1653 = vpop.permute.xlu0 %1652
        %v1656 = vsel %vm475, %v1641, 0
        %v1659 = vsel %vm475, %v1642, 0
        %1661 = vmatpush.msra.mxu0 0.0
        %1662 = vmatpush.msra.mxu0 0.0
        %1663 = vmatpush.msra.mxu0 0.0
        %1664 = vmatpush.msra.mxu0 0.0
        %1665 = vmatpush.msra.mxu0 0.0
        %1666 = vmatpush.msra.mxu0 0.0
        %1667 = vmatpush.msra.mxu0 0.0
        %1668 = vmatpush.msra.mxu0 0.0
        %1669 = vmatpush.msra.mxu0 0.0
        %1670 = vmatpush.msra.mxu0 0.0
        %1671 = vmatpush.msra.mxu0 0.0
        %1672 = vmatpush.msra.mxu0 0.0
        %1673 = vmatpush.msra.mxu0 0.0
        %1674 = vmatpush.msra.mxu0 0.0
        %1675 = vmatpush.msra.mxu0 0.0
        %1676 = vmatpush.msra.mxu0 %v1639
        %1677 = vmatmul.f32.gmra.mxu0 %v1656
        %v1678 = vpop.f32.mrf.mxu0
        %v1679 = vadd.f32 %v1648, %v1678
        %1680 = vmatmul.f32.gmra.mxu0 %v1659
        %v1681 = vpop.f32.mrf.mxu0
        %v1682 = vadd.f32 %v1653, %v1681
        %1683 = vdwg.mxu0
        %1684 = vmatpush.msra.mxu0 0.0
        %1685 = vmatpush.msra.mxu0 0.0
        %1686 = vmatpush.msra.mxu0 0.0
        %1687 = vmatpush.msra.mxu0 0.0
        %1688 = vmatpush.msra.mxu0 0.0
        %1689 = vmatpush.msra.mxu0 0.0
        %1690 = vmatpush.msra.mxu0 0.0
        %1691 = vmatpush.msra.mxu0 0.0
        %1692 = vmatpush.msra.mxu0 0.0
        %1693 = vmatpush.msra.mxu0 0.0
        %1694 = vmatpush.msra.mxu0 0.0
        %1695 = vmatpush.msra.mxu0 0.0
        %1696 = vmatpush.msra.mxu0 0.0
        %1697 = vmatpush.msra.mxu0 0.0
        %1698 = vmatpush.msra.mxu0 0.0
        %1699 = vmatpush.msra.mxu0 %v1640
        %1700 = vmatmul.f32.gmra.mxu0 %v1656
        %v1701 = vpop.f32.mrf.mxu0
        %v1702 = vadd.f32 %v1648, %v1701
        %1703 = vmatmul.f32.gmra.mxu0 %v1659
        %v1704 = vpop.f32.mrf.mxu0
        %v1705 = vadd.f32 %v1653, %v1704
        %1706 = vdwg.mxu0
        %v1707 = vld [vmem:[%s12] sm:$0xff]
        %v1708 = vld [vmem:[%s12 + $0x8] sm:$0xff]
        %v1710 = vsel %vm475, %v1707, 0
        %v1713 = vsel %vm475, %v1708, 0
        %1715 = vmatpush.msra.mxu0 0.0
        %1716 = vmatpush.msra.mxu0 0.0
        %1717 = vmatpush.msra.mxu0 0.0
        %1718 = vmatpush.msra.mxu0 0.0
        %1719 = vmatpush.msra.mxu0 0.0
        %1720 = vmatpush.msra.mxu0 0.0
        %1721 = vmatpush.msra.mxu0 0.0
        %1722 = vmatpush.msra.mxu0 0.0
        %1723 = vmatpush.msra.mxu0 0.0
        %1724 = vmatpush.msra.mxu0 0.0
        %1725 = vmatpush.msra.mxu0 0.0
        %1726 = vmatpush.msra.mxu0 0.0
        %1727 = vmatpush.msra.mxu0 0.0
        %1728 = vmatpush.msra.mxu0 0.0
        %1729 = vmatpush.msra.mxu0 0.0
        %1730 = vmatpush.msra.mxu0 %v466
        %1731 = vmatmul.f32.gmra.mxu0 %v1710
        %v1732 = vpop.f32.mrf.mxu0
        %v1733 = vadd.f32 0.0, %v1732
        %1734 = vmatmul.f32.gmra.mxu0 %v1713
        %v1735 = vpop.f32.mrf.mxu0
        %v1736 = vadd.f32 0.0, %v1735
        %1737 = vdwg.mxu0
        %1738 = vmatpush.msra.mxu0 0.0
        %1739 = vmatpush.msra.mxu0 0.0
        %1740 = vmatpush.msra.mxu0 0.0
        %1741 = vmatpush.msra.mxu0 0.0
        %1742 = vmatpush.msra.mxu0 0.0
        %1743 = vmatpush.msra.mxu0 0.0
        %1744 = vmatpush.msra.mxu0 0.0
        %1745 = vmatpush.msra.mxu0 0.0
        %1746 = vmatpush.msra.mxu0 0.0
        %1747 = vmatpush.msra.mxu0 0.0
        %1748 = vmatpush.msra.mxu0 0.0
        %1749 = vmatpush.msra.mxu0 0.0
        %1750 = vmatpush.msra.mxu0 0.0
        %1751 = vmatpush.msra.mxu0 0.0
        %1752 = vmatpush.msra.mxu0 0.0
        %1753 = vmatpush.msra.mxu0 %v467
        %1754 = vmatmul.f32.gmra.mxu0 %v1710
        %v1755 = vpop.f32.mrf.mxu0
        %v1756 = vadd.f32 0.0, %v1755
        %1757 = vmatmul.f32.gmra.mxu0 %v1713
        %v1758 = vpop.f32.mrf.mxu0
        %v1759 = vadd.f32 0.0, %v1758
        %1760 = vdwg.mxu0
        %v1761 = vadd.f32 %v1679, %v1733
        %v1762 = vadd.f32 %v1702, %v1756
        %v1763 = vadd.f32 %v1682, %v1736
        %v1764 = vadd.f32 %v1705, %v1759
        %v1765 = vld [vmem:[%s13] sm:$0xff]
        %v1766 = vld [vmem:[%s13 + $0x8] sm:$0xff]
        %1768 = vset.pattern.permute.xlu0 0
        %1769 = vperm.xlu0 %1768, %v1765
        %v1770 = vpop.permute.xlu0 %1769
        %1773 = vset.pattern.permute.xlu0 0
        %1774 = vperm.xlu0 %1773, %v1766
        %v1775 = vpop.permute.xlu0 %1774
        %v1777 = vadd.f32 %v1761, %v1770
        %v1778 = vadd.f32 %v1762, %v1770
        %v1779 = vadd.f32 %v1763, %v1775
        %v1780 = vadd.f32 %v1764, %v1775
        %1781 = vst [vmem:[%s460] sm:$0xff] %v1777
        %1782 = vst [vmem:[%s460 + $0x8] sm:$0xff] %v1778
        %1783 = vst [vmem:[%s460 + $0x10] sm:$0xff] %v1779
        %1784 = vst [vmem:[%s460 + $0x18] sm:$0xff] %v1780
        %s1785 = sand.u32 %s335, 1
        %s1786 = scalar_lea.sflag [#allocation3], %s1785
        %s1787 = sand.u32 %s335, 1
        %s1788 = smul.addr %s1787, 32
        %s1789 = scalar_lea.vmem [#allocation2], %s1788
        // Predicated region
        $region77: #{tpu_custom_call.1} parent=75 // pred_check
          %p1790 = pneg %p345
        $region78: #{tpu_custom_call.1} parent=75 // pred_check_branch
          %1792 = sbr.rel (%p1790) target = $region80
        $region79: #{tpu_custom_call.1} parent=75 // pred_region
          %1794 = vsyncadd %s1786, 0
          %s1795 = smul.addr %s28, 4
          %s1796 = smul.addr %s1795, 8
          %s1797 = scalar_lea.hbm %s14, %s1796
          %s1798 = sshll.u32 %s1789, 4
          %s1799 = int_to_ptr.vmem [resolvable:$true] %s1798
          %s1800 = sshll.u32 %s1797, 4
          %s1801 = int_to_ptr.hbm [resolvable:$true] %s1800
          %1806 = dma.vmem_to_hbm [thread:$0]  %s1799, 512, %s1801, %s1786, 256, 256, 16
        $region80: #{tpu_custom_call.1} parent=75 // pred_fallthru
          _
      $region76: #{tpu_custom_call.1} parent=5 // pred_fallthru
        _
      %p1807 = scmp.le.s32.totalorder 2, %s23
      // Predicated region
      $region81: #{tpu_custom_call.1} parent=5 // pred_check
        %p1808 = pneg %p1807
      $region82: #{tpu_custom_call.1} parent=5 // pred_check_branch
        %1810 = sbr.rel (%p1808) target = $region84
      $region83: #{tpu_custom_call.1} parent=5 // pred_region
        %s1811 = ssub.s32 %s23, 2
        // Predicated region
        $region85: #{tpu_custom_call.1} parent=83 // pred_check
          %p1812 = pneg %p351
        $region86: #{tpu_custom_call.1} parent=83 // pred_check_branch
          %1814 = sbr.rel (%p1812) target = $region88
        $region87: #{tpu_custom_call.1} parent=83 // pred_region
          %s1815 = sand.u32 %s336, 1
          %s1816 = scalar_lea.sflag [#allocation3], %s1815
          %s1817 = sand.u32 %s336, 1
          %s1818 = smul.addr %s1817, 32
          %s1819 = scalar_lea.vmem [#allocation2], %s1818
          %1821 = dma.done %s1816, 512
        $region88: #{tpu_custom_call.1} parent=83 // pred_fallthru
          _
      $region84: #{tpu_custom_call.1} parent=5 // pred_fallthru
        _
    $region6: #{tpu_custom_call.1} parent=1 // loop_footer
      %s27 = sadd.s32 1, %s23
    $region7: #{tpu_custom_call.1} parent=1 // loop_footer_branch
      %22 = sbr.rel target = $region3
    $region8: #{tpu_custom_call.1} parent=1 // loop_exit
      _
    %1822 = vsyncpa [#allocation3], 1
    %s1823 = scalar_lea.sflag [#allocation3], 1
    %1824 = vsyncpa %s1823, 1

</llo_original>
